<compile_context>
chip_gen: v5e
topology: v5e:2x2
jax: 0.10.0
libtpu: 0.0.40
codegen_flags: <defaults>
</compile_context>

<pallas_src>
import math
from functools import partial

import jax
import jax.numpy as jnp
import numpy as np
from jax.experimental import pallas as pl
from jax.experimental.pallas import tpu as pltpu

LN_EPS = 1e-5  # nn.LayerNorm default


def _layernorm(x, g, b):
    mu = jnp.mean(x, axis=-1, keepdims=True)
    var = jnp.mean((x - mu) ** 2, axis=-1, keepdims=True)
    return (x - mu) * jax.lax.rsqrt(var + LN_EPS) * g + b


def _gelu_exact(x):
    # nn.GELU() default: exact erf-based GELU.
    return 0.5 * x * (1.0 + jax.lax.erf(x * (1.0 / math.sqrt(2.0))))


def fused_blocks_kernel(
    x_ref, bias_ref,
    ln1_g, ln1_b, wqkv, bqkv, wo, bo,
    ln2_g, ln2_b, w1, b1, w2, b2,
    out_ref, res_ref, *, heads, d_k):
    """One grid step = one (batch tile, transformer block) pair."""
    layer = pl.program_id(1)
    n_layers = pl.num_programs(1)
    bf16 = jnp.bfloat16

    # Initialize the residual stream from the input at the first layer.
    @pl.when(layer == 0)
    def _():
        res_ref[...] = x_ref[...]

    x = res_ref[...]                       # (Bt, S, H) f32 residual stream
    Bt, S, H = x.shape
    bias = bias_ref[...]                   # (Bt, 1, S) additive key-padding bias

    # ---- self-attention sublayer: x + Wo(MHA(LN(x))) ----
    xn = _layernorm(x, ln1_g[0], ln1_b[0]).astype(bf16)          # (Bt, S, H)
    xn2d = xn.reshape(Bt * S, H)

    # Lane-dense fused QKV projection: one (Bt*S, H) @ (H, 3H) MXU matmul.
    # 1/sqrt(d_k) is already folded into the Q columns of wqkv / bqkv.
    qkv = jnp.dot(xn2d, wqkv[0], preferred_element_type=jnp.float32) + bqkv[0]
    qkv = qkv.reshape(Bt, S, 3 * H).astype(bf16)                 # (Bt, S, 3H)

    # Per-head attention with the head-merge folded into the output projection:
    # attn += ctx_h @ Wo[h*d_k:(h+1)*d_k, :]  (MXU accumulates over heads).
    attn = jnp.zeros((Bt * S, H), jnp.float32)
    for h in range(heads):                 # heads is a small static int
        lo = h * d_k
        qh = qkv[:, :, lo:lo + d_k]                        # (Bt, S, d_k) bf16
        kh = qkv[:, :, H + lo:H + lo + d_k]
        vh = qkv[:, :, 2 * H + lo:2 * H + lo + d_k]

        s = jnp.einsum("bqd,bkd->bqk", qh, kh,
                       preferred_element_type=jnp.float32)      # (Bt, S, S)
        s = s + bias                                            # (Bt,1,S) bcast
        s = s - jnp.max(s, axis=-1, keepdims=True)
        e = jnp.exp(s)
        p = e * pl.reciprocal(jnp.sum(e, axis=-1, keepdims=True), approx=True)
        ctx = jnp.einsum("bqk,bkd->bqd", p.astype(bf16), vh,
                         preferred_element_type=jnp.float32)    # (Bt, S, d_k)
        attn = attn + jnp.dot(ctx.astype(bf16).reshape(Bt * S, d_k),
                              wo[0, lo:lo + d_k, :],
                              preferred_element_type=jnp.float32)

    attn = (attn + bo[0]).reshape(Bt, S, H)
    x = x + attn

    # ---- feed-forward sublayer: x + W2(GELU(W1(LN(x)))) ----
    xn2 = _layernorm(x, ln2_g[0], ln2_b[0]).astype(bf16).reshape(Bt * S, H)
    h1 = jnp.dot(xn2, w1[0], preferred_element_type=jnp.float32) + b1[0]
    h1 = _gelu_exact(h1).astype(bf16)
    ff = jnp.dot(h1, w2[0], preferred_element_type=jnp.float32) + b2[0]

    y = x + ff.reshape(Bt, S, H)
    res_ref[...] = y

    @pl.when(layer == n_layers - 1)
    def _():
        out_ref[...] = y


def _param_spec(arr):
    """Block = one layer's slice of a (L, ...) stacked parameter."""
    nd = arr.ndim
    blk = (1,) + tuple(arr.shape[1:])
    return pl.BlockSpec(blk, lambda b, l, _nd=nd: (l,) + (0,) * (_nd - 1))


def _vmem_limit_bytes(packed, Bt, S, H, d_ff):
    per_layer = sum(int(np.prod(a.shape[1:])) * a.dtype.itemsize for a in packed)
    io = (2 * Bt * S * H + Bt * S) * 4                    # x / out / bias blocks
    est = 2 * (per_layer + io)                            # double-buffered blocks
    est += Bt * S * H * 4                                 # residual scratch
    est += (3 * Bt * S * H + 3 * Bt * S * S               # qkv + score/softmax temps
            + Bt * S * d_ff + 4 * Bt * S * H) * 4
    est = int(est * 2)                                    # padding / layout headroom
    try:
        cap = int(pltpu.get_tpu_info().vmem_capacity_bytes * 0.85)
    except Exception:                                     # conservative fallback
        cap = 56 * 1024 * 1024
    return max(min(est, cap), 16 * 1024 * 1024)


def pack_layer_params(layer_params, heads, wdtype=jnp.bfloat16):
    """One-time weight packing: stack layers, fuse QKV, fold 1/sqrt(d_k), cast bf16.

    Call once and reuse the result across transformer_layer calls.
    """
    H = layer_params[0]["wq"].shape[0]
    d_k = H // heads
    scale = 1.0 / math.sqrt(d_k)

    def stack(name):
        return jnp.stack([p[name] for p in layer_params], axis=0)

    def vec(name):                                        # (L, 1, dim) f32
        return stack(name)[:, None, :]

    wqkv = jnp.concatenate(
        [stack("wq") * scale, stack("wk"), stack("wv")], axis=-1).astype(wdtype)
    bqkv = jnp.concatenate(
        [stack("bq") * scale, stack("bk"), stack("bv")], axis=-1)[:, None, :]

    return [
        vec("ln1_g"), vec("ln1_b"),
        wqkv, bqkv,
        stack("wo").astype(wdtype), vec("bo"),
        vec("ln2_g"), vec("ln2_b"),
        stack("w1").astype(wdtype), vec("b1"),
        stack("w2").astype(wdtype), vec("b2"),
    ]


def transformer_layer(x, key_mask, packed, heads, batch_tile=None):
    """Fused forward of TransformerLayer (all blocks in one pallas_call).

    key_mask: (B, 1, S) with 1 = attend, 0 = mask (key padding mask).
    packed:   output of pack_layer_params (cache it across calls).
    """
    B, S, H = x.shape
    L = packed[0].shape[0]
    d_ff = packed[8].shape[-1]
    d_k = H // heads

    if batch_tile is None:
        batch_tile = B          # amortize weight DMA over the whole batch
    assert B % batch_tile == 0

    # Additive attention bias, computed exactly once (not per layer / in-kernel).
    bias = jnp.where(key_mask == 0, -1e9, 0.0).astype(jnp.float32)   # (B, 1, S)

    in_specs = [pl.BlockSpec((batch_tile, S, H), lambda b, l: (b, 0, 0)),
                pl.BlockSpec((batch_tile, 1, S), lambda b, l: (b, 0, 0))]
    in_specs += [_param_spec(a) for a in packed]

    return pl.pallas_call(
        partial(fused_blocks_kernel, heads=heads, d_k=d_k),
        out_shape=jax.ShapeDtypeStruct((B, S, H), jnp.float32),
        grid=(B // batch_tile, L),
        in_specs=in_specs,
        out_specs=pl.BlockSpec((batch_tile, S, H), lambda b, l: (b, 0, 0)),
        scratch_shapes=[pltpu.VMEM((batch_tile, S, H), jnp.float32)],
        compiler_params=pltpu.CompilerParams(
            dimension_semantics=("parallel", "arbitrary"),
            vmem_limit_bytes=_vmem_limit_bytes(packed, batch_tile, S, H, d_ff)),
    )(x, bias, *packed)


def init_block_params(key, hidden, d_ff):
    ks = jax.random.split(key, 12)
    std = 0.02
    f32 = jnp.float32
    return {
        "ln1_g": jnp.ones((hidden,), f32),
        "ln1_b": jnp.zeros((hidden,), f32),
        "wq": jax.random.normal(ks[0], (hidden, hidden), f32) * std,
        "bq": jax.random.normal(ks[1], (hidden,), f32) * std,
        "wk": jax.random.normal(ks[2], (hidden, hidden), f32) * std,
        "bk": jax.random.normal(ks[3], (hidden,), f32) * std,
        "wv": jax.random.normal(ks[4], (hidden, hidden), f32) * std,
        "bv": jax.random.normal(ks[5], (hidden,), f32) * std,
        "wo": jax.random.normal(ks[6], (hidden, hidden), f32) * std,
        "bo": jax.random.normal(ks[7], (hidden,), f32) * std,
        "ln2_g": jnp.ones((hidden,), f32),
        "ln2_b": jnp.zeros((hidden,), f32),
        "w1": jax.random.normal(ks[8], (hidden, d_ff), f32) * std,
        "b1": jax.random.normal(ks[9], (d_ff,), f32) * std,
        "w2": jax.random.normal(ks[10], (d_ff, hidden), f32) * std,
        "b2": jax.random.normal(ks[11], (hidden,), f32) * std,
    }


def reference_block(x, key_mask, p, heads):
    """Pure-JAX f32 mirror of the PyTorch TransformerBlock.forward (eval mode)."""
    B, S, H = x.shape
    d_k = H // heads

    def ln(v, g, b):
        mu = v.mean(-1, keepdims=True)
        var = ((v - mu) ** 2).mean(-1, keepdims=True)
        return (v - mu) / jnp.sqrt(var + LN_EPS) * g + b

    xn = ln(x, p["ln1_g"], p["ln1_b"])
    q = xn @ p["wq"] + p["bq"]
    k = xn @ p["wk"] + p["bk"]
    v = xn @ p["wv"] + p["bv"]
    q = q.reshape(B, S, heads, d_k).transpose(0, 2, 1, 3)
    k = k.reshape(B, S, heads, d_k).transpose(0, 2, 1, 3)
    v = v.reshape(B, S, heads, d_k).transpose(0, 2, 1, 3)
    s = jnp.einsum("bhqd,bhkd->bhqk", q, k) / math.sqrt(d_k)
    s = jnp.where(key_mask[:, None] == 0, -1e9, s)          # (B,1,1,S) broadcast
    pa = jax.nn.softmax(s, axis=-1)
    attn = jnp.einsum("bhqk,bhkd->bhqd", pa, v)
    attn = attn.transpose(0, 2, 1, 3).reshape(B, S, H)
    attn = attn @ p["wo"] + p["bo"]
    x = x + attn
    xn2 = ln(x, p["ln2_g"], p["ln2_b"])
    h1 = xn2 @ p["w1"] + p["b1"]
    h1 = 0.5 * h1 * (1.0 + jax.lax.erf(h1 / math.sqrt(2.0)))
    return x + h1 @ p["w2"] + p["b2"]


if __name__ == "__main__":
    # TransformerLayer(hidden_size=32, num_heads=4, num_layers=2,
    #                  dim_feedforward=64, dropout=0.1)  [eval mode]
    B, S, H = 2, 8, 32
    heads, d_ff, num_layers = 4, 64, 2

    root = jax.random.PRNGKey(0)
    k_x, k_params = jax.random.split(root)

    x = jax.random.normal(k_x, (B, S, H), jnp.float32)

    # key-padding mask: batch 0 attends to all 8 keys, batch 1 to the first 5.
    lengths = jnp.array([8, 5], jnp.int32)
    key_idx = jnp.arange(S)[None, None, :]                           # (1,1,S)
    key_mask = (key_idx < lengths[:, None, None]).astype(jnp.float32)  # (B,1,S)

    layer_keys = jax.random.split(k_params, num_layers)
    layer_params = [init_block_params(k, H, d_ff) for k in layer_keys]

    # One-time weight packing (cache and reuse across calls).
    packed = pack_layer_params(layer_params, heads)

    out = transformer_layer(x, key_mask, packed, heads)
    out = jax.block_until_ready(out)

    # correctness check against a pure-JAX f32 reference
    ref = x
    for p in layer_params:
        ref = reference_block(ref, key_mask, p, heads)
    ref = jax.block_until_ready(ref)

    np.testing.assert_allclose(np.asarray(out), np.asarray(ref),
                               atol=1e-2, rtol=1e-2)
    print("KERNEL_OK")
</pallas_src>

<mosaic_0001>
module attributes {stable_mosaic.version = 11 : i64} {
  func.func @fused_blocks_kernel(%arg0: i32, %arg1: i32, %arg2: memref<2x8x32xf32, #tpu.memory_space<vmem>>, %arg3: memref<2x1x8xf32, #tpu.memory_space<vmem>>, %arg4: memref<1x1x32xf32, #tpu.memory_space<vmem>>, %arg5: memref<1x1x32xf32, #tpu.memory_space<vmem>>, %arg6: memref<1x32x96xbf16, #tpu.memory_space<vmem>>, %arg7: memref<1x1x96xf32, #tpu.memory_space<vmem>>, %arg8: memref<1x32x32xbf16, #tpu.memory_space<vmem>>, %arg9: memref<1x1x32xf32, #tpu.memory_space<vmem>>, %arg10: memref<1x1x32xf32, #tpu.memory_space<vmem>>, %arg11: memref<1x1x32xf32, #tpu.memory_space<vmem>>, %arg12: memref<1x32x64xbf16, #tpu.memory_space<vmem>>, %arg13: memref<1x1x64xf32, #tpu.memory_space<vmem>>, %arg14: memref<1x64x32xbf16, #tpu.memory_space<vmem>>, %arg15: memref<1x1x32xf32, #tpu.memory_space<vmem>>, %arg16: memref<2x8x32xf32, #tpu.memory_space<vmem>>, %arg17: memref<2x8x32xf32, #tpu.memory_space<vmem>>) attributes {dimension_semantics = [#tpu.dimension_semantics<parallel>, #tpu.dimension_semantics<arbitrary>], iteration_bounds = array<i64: 1, 2>, scalar_prefetch = 0 : i64, scratch_operands = 1 : i64, tpu.core_type = #tpu.core_type<tc>, window_params = [{transform_indices = @transform_0, window_bounds = array<i64: 2, 8, 32>}, {transform_indices = @transform_1, window_bounds = array<i64: 2, 1, 8>}, {transform_indices = @transform_2, window_bounds = array<i64: 1, 1, 32>}, {transform_indices = @transform_3, window_bounds = array<i64: 1, 1, 32>}, {transform_indices = @transform_4, window_bounds = array<i64: 1, 32, 96>}, {transform_indices = @transform_5, window_bounds = array<i64: 1, 1, 96>}, {transform_indices = @transform_6, window_bounds = array<i64: 1, 32, 32>}, {transform_indices = @transform_7, window_bounds = array<i64: 1, 1, 32>}, {transform_indices = @transform_8, window_bounds = array<i64: 1, 1, 32>}, {transform_indices = @transform_9, window_bounds = array<i64: 1, 1, 32>}, {transform_indices = @transform_10, window_bounds = array<i64: 1, 32, 64>}, {transform_indices = @transform_11, window_bounds = array<i64: 1, 1, 64>}, {transform_indices = @transform_12, window_bounds = array<i64: 1, 64, 32>}, {transform_indices = @transform_13, window_bounds = array<i64: 1, 1, 32>}, {transform_indices = @transform_14, window_bounds = array<i64: 2, 8, 32>}]} {
    %c0_i32 = arith.constant 0 : i32
    %0 = arith.cmpi eq, %arg1, %c0_i32 : i32
    %1 = arith.extui %0 : i1 to i32
    %c0_i32_0 = arith.constant 0 : i32
    %2 = arith.cmpi ne, %1, %c0_i32_0 : i32
    scf.if %2 {
      %c0_88 = arith.constant 0 : index
      %c0_89 = arith.constant 0 : index
      %c0_90 = arith.constant 0 : index
      %206 = vector.load %arg2[%c0_88, %c0_89, %c0_90] : memref<2x8x32xf32, #tpu.memory_space<vmem>>, vector<2x8x32xf32>
      %c0_91 = arith.constant 0 : index
      %c0_92 = arith.constant 0 : index
      %c0_93 = arith.constant 0 : index
      %207 = vector.load %arg17[%c0_91, %c0_92, %c0_93] : memref<2x8x32xf32, #tpu.memory_space<vmem>>, vector<2x8x32xf32>
      tpu.vector_store %arg17[%c0_91, %c0_92, %c0_93], %206 {strides = array<i32>} : memref<2x8x32xf32, #tpu.memory_space<vmem>>, vector<2x8x32xf32>,
    } else {
    }
    %c0 = arith.constant 0 : index
    %c0_1 = arith.constant 0 : index
    %c0_2 = arith.constant 0 : index
    %3 = vector.load %arg17[%c0, %c0_1, %c0_2] : memref<2x8x32xf32, #tpu.memory_space<vmem>>, vector<2x8x32xf32>
    %c0_3 = arith.constant 0 : index
    %c0_4 = arith.constant 0 : index
    %c0_5 = arith.constant 0 : index
    %4 = vector.load %arg3[%c0_3, %c0_4, %c0_5] : memref<2x1x8xf32, #tpu.memory_space<vmem>>, vector<2x1x8xf32>
    %c0_6 = arith.constant 0 : index
    %c0_7 = arith.constant 0 : index
    %c0_8 = arith.constant 0 : index
    %5 = vector.load %arg4[%c0_6, %c0_7, %c0_8] : memref<1x1x32xf32, #tpu.memory_space<vmem>>, vector<1x1x32xf32>
    %6 = vector.shape_cast %5 : vector<1x1x32xf32> to vector<1x32xf32>
    %c0_9 = arith.constant 0 : index
    %c0_10 = arith.constant 0 : index
    %c0_11 = arith.constant 0 : index
    %7 = vector.load %arg5[%c0_9, %c0_10, %c0_11] : memref<1x1x32xf32, #tpu.memory_space<vmem>>, vector<1x1x32xf32>
    %8 = vector.shape_cast %7 : vector<1x1x32xf32> to vector<1x32xf32>
    %cst = arith.constant dense<0.000000e+00> : vector<2x8xf32>
    %9 = vector.multi_reduction <add>, %3, %cst [2] : vector<2x8x32xf32> to vector<2x8xf32>
    %10 = vector.shape_cast %9 : vector<2x8xf32> to vector<2x8x1xf32>
    %cst_12 = arith.constant 3.200000e+01 : f32
    %11 = vector.broadcast %cst_12 : f32 to vector<2x8x1xf32>
    %12 = arith.divf %10, %11 : vector<2x8x1xf32>
    %13 = vector.broadcast %12 : vector<2x8x1xf32> to vector<2x8x32xf32>
    %14 = arith.subf %3, %13 : vector<2x8x32xf32>
    %15 = arith.mulf %14, %14 : vector<2x8x32xf32>
    %cst_13 = arith.constant dense<0.000000e+00> : vector<2x8xf32>
    %16 = vector.multi_reduction <add>, %15, %cst_13 [2] : vector<2x8x32xf32> to vector<2x8xf32>
    %17 = vector.shape_cast %16 : vector<2x8xf32> to vector<2x8x1xf32>
    %cst_14 = arith.constant 3.200000e+01 : f32
    %18 = vector.broadcast %cst_14 : f32 to vector<2x8x1xf32>
    %19 = arith.divf %17, %18 : vector<2x8x1xf32>
    %20 = vector.broadcast %12 : vector<2x8x1xf32> to vector<2x8x32xf32>
    %21 = arith.subf %3, %20 : vector<2x8x32xf32>
    %cst_15 = arith.constant 9.99999974E-6 : f32
    %22 = vector.broadcast %cst_15 : f32 to vector<2x8x1xf32>
    %23 = arith.addf %19, %22 : vector<2x8x1xf32>
    %24 = math.rsqrt %23 : vector<2x8x1xf32>
    %25 = vector.broadcast %24 : vector<2x8x1xf32> to vector<2x8x32xf32>
    %26 = arith.mulf %21, %25 : vector<2x8x32xf32>
    %27 = vector.shape_cast %6 : vector<1x32xf32> to vector<1x1x32xf32>
    %28 = vector.broadcast %27 : vector<1x1x32xf32> to vector<2x8x32xf32>
    %29 = arith.mulf %26, %28 : vector<2x8x32xf32>
    %30 = vector.shape_cast %8 : vector<1x32xf32> to vector<1x1x32xf32>
    %31 = vector.broadcast %30 : vector<1x1x32xf32> to vector<2x8x32xf32>
    %32 = arith.addf %29, %31 : vector<2x8x32xf32>
    %33 = arith.truncf %32 : vector<2x8x32xf32> to vector<2x8x32xbf16>
    %34 = vector.shape_cast %33 : vector<2x8x32xbf16> to vector<16x32xbf16>
    %c0_16 = arith.constant 0 : index
    %c0_17 = arith.constant 0 : index
    %c0_18 = arith.constant 0 : index
    %35 = vector.load %arg6[%c0_16, %c0_17, %c0_18] : memref<1x32x96xbf16, #tpu.memory_space<vmem>>, vector<1x32x96xbf16>
    %36 = vector.shape_cast %35 : vector<1x32x96xbf16> to vector<32x96xbf16>
    %cst_19 = arith.constant dense<0.000000e+00> : vector<16x96xf32>
    %37 = tpu.matmul %34, %36, %cst_19 {dimension_numbers = #tpu.dot_dimension_numbers<[1], [0], [0], [1], [0, 0, 1, 1], [], []>} : vector<16x32xbf16>, vector<32x96xbf16>, vector<16x96xf32> -> vector<16x96xf32>
    %c0_20 = arith.constant 0 : index
    %c0_21 = arith.constant 0 : index
    %c0_22 = arith.constant 0 : index
    %38 = vector.load %arg7[%c0_20, %c0_21, %c0_22] : memref<1x1x96xf32, #tpu.memory_space<vmem>>, vector<1x1x96xf32>
    %39 = vector.shape_cast %38 : vector<1x1x96xf32> to vector<1x96xf32>
    %40 = vector.broadcast %39 : vector<1x96xf32> to vector<16x96xf32>
    %41 = arith.addf %37, %40 : vector<16x96xf32>
    %42 = vector.shape_cast %41 : vector<16x96xf32> to vector<2x8x96xf32>
    %43 = arith.truncf %42 : vector<2x8x96xf32> to vector<2x8x96xbf16>
    %cst_23 = arith.constant 0.000000e+00 : f32
    %44 = vector.broadcast %cst_23 : f32 to vector<16x32xf32>
    %45 = vector.extract_strided_slice %43 {offsets = [0, 0, 0], sizes = [2, 8, 8], strides = [1, 1, 1]} : vector<2x8x96xbf16> to vector<2x8x8xbf16>
    %46 = vector.extract_strided_slice %43 {offsets = [0, 0, 32], sizes = [2, 8, 8], strides = [1, 1, 1]} : vector<2x8x96xbf16> to vector<2x8x8xbf16>
    %47 = vector.extract_strided_slice %43 {offsets = [0, 0, 64], sizes = [2, 8, 8], strides = [1, 1, 1]} : vector<2x8x96xbf16> to vector<2x8x8xbf16>
    "tpu.trace_start"() <{level = 10 : i32, message = "bqd,bkd->bqk"}> : () -> ()
    %cst_24 = arith.constant dense<0.000000e+00> : vector<2x8x8xf32>
    %48 = tpu.matmul %45, %46, %cst_24 {dimension_numbers = #tpu.dot_dimension_numbers<[2], [2], [1], [1], [0, 0, 0, 1, 1, 1], [0], [0]>} : vector<2x8x8xbf16>, vector<2x8x8xbf16>, vector<2x8x8xf32> -> vector<2x8x8xf32>
    "tpu.trace_stop"() : () -> ()
    %49 = vector.broadcast %4 : vector<2x1x8xf32> to vector<2x8x8xf32>
    %50 = arith.addf %48, %49 : vector<2x8x8xf32>
    %cst_25 = arith.constant dense<0xFF800000> : vector<2x8xf32>
    %51 = vector.multi_reduction <maximumf>, %50, %cst_25 [2] : vector<2x8x8xf32> to vector<2x8xf32>
    %52 = vector.shape_cast %51 : vector<2x8xf32> to vector<2x8x1xf32>
    %53 = vector.broadcast %52 : vector<2x8x1xf32> to vector<2x8x8xf32>
    %54 = arith.subf %50, %53 : vector<2x8x8xf32>
    %55 = math.exp %54 : vector<2x8x8xf32>
    %cst_26 = arith.constant dense<0.000000e+00> : vector<2x8xf32>
    %56 = vector.multi_reduction <add>, %55, %cst_26 [2] : vector<2x8x8xf32> to vector<2x8xf32>
    %57 = vector.shape_cast %56 : vector<2x8xf32> to vector<2x8x1xf32>
    %58 = tpu.reciprocal %57 {approx = true} : vector<2x8x1xf32> -> vector<2x8x1xf32>
    %59 = vector.broadcast %58 : vector<2x8x1xf32> to vector<2x8x8xf32>
    %60 = arith.mulf %55, %59 : vector<2x8x8xf32>
    %61 = arith.truncf %60 : vector<2x8x8xf32> to vector<2x8x8xbf16>
    "tpu.trace_start"() <{level = 10 : i32, message = "bqk,bkd->bqd"}> : () -> ()
    %cst_27 = arith.constant dense<0.000000e+00> : vector<2x8x8xf32>
    %62 = tpu.matmul %61, %47, %cst_27 {dimension_numbers = #tpu.dot_dimension_numbers<[2], [1], [1], [2], [0, 0, 0, 1, 1, 2], [0], [0]>} : vector<2x8x8xbf16>, vector<2x8x8xbf16>, vector<2x8x8xf32> -> vector<2x8x8xf32>
    "tpu.trace_stop"() : () -> ()
    %63 = arith.truncf %62 : vector<2x8x8xf32> to vector<2x8x8xbf16>
    %64 = vector.shape_cast %63 : vector<2x8x8xbf16> to vector<16x8xbf16>
    %c0_28 = arith.constant 0 : index
    %c0_29 = arith.constant 0 : index
    %c0_30 = arith.constant 0 : index
    %65 = vector.load %arg8[%c0_28, %c0_29, %c0_30] : memref<1x32x32xbf16, #tpu.memory_space<vmem>>, vector<1x8x32xbf16>
    %66 = vector.shape_cast %65 : vector<1x8x32xbf16> to vector<8x32xbf16>
    %cst_31 = arith.constant dense<0.000000e+00> : vector<16x32xf32>
    %67 = tpu.matmul %64, %66, %cst_31 {dimension_numbers = #tpu.dot_dimension_numbers<[1], [0], [0], [1], [0, 0, 1, 1], [], []>} : vector<16x8xbf16>, vector<8x32xbf16>, vector<16x32xf32> -> vector<16x32xf32>
    %68 = arith.addf %44, %67 : vector<16x32xf32>
    %69 = vector.extract_strided_slice %43 {offsets = [0, 0, 8], sizes = [2, 8, 8], strides = [1, 1, 1]} : vector<2x8x96xbf16> to vector<2x8x8xbf16>
    %70 = vector.extract_strided_slice %43 {offsets = [0, 0, 40], sizes = [2, 8, 8], strides = [1, 1, 1]} : vector<2x8x96xbf16> to vector<2x8x8xbf16>
    %71 = vector.extract_strided_slice %43 {offsets = [0, 0, 72], sizes = [2, 8, 8], strides = [1, 1, 1]} : vector<2x8x96xbf16> to vector<2x8x8xbf16>
    "tpu.trace_start"() <{level = 10 : i32, message = "bqd,bkd->bqk"}> : () -> ()
    %cst_32 = arith.constant dense<0.000000e+00> : vector<2x8x8xf32>
    %72 = tpu.matmul %69, %70, %cst_32 {dimension_numbers = #tpu.dot_dimension_numbers<[2], [2], [1], [1], [0, 0, 0, 1, 1, 1], [0], [0]>} : vector<2x8x8xbf16>, vector<2x8x8xbf16>, vector<2x8x8xf32> -> vector<2x8x8xf32>
    "tpu.trace_stop"() : () -> ()
    %73 = vector.broadcast %4 : vector<2x1x8xf32> to vector<2x8x8xf32>
    %74 = arith.addf %72, %73 : vector<2x8x8xf32>
    %cst_33 = arith.constant dense<0xFF800000> : vector<2x8xf32>
    %75 = vector.multi_reduction <maximumf>, %74, %cst_33 [2] : vector<2x8x8xf32> to vector<2x8xf32>
    %76 = vector.shape_cast %75 : vector<2x8xf32> to vector<2x8x1xf32>
    %77 = vector.broadcast %76 : vector<2x8x1xf32> to vector<2x8x8xf32>
    %78 = arith.subf %74, %77 : vector<2x8x8xf32>
    %79 = math.exp %78 : vector<2x8x8xf32>
    %cst_34 = arith.constant dense<0.000000e+00> : vector<2x8xf32>
    %80 = vector.multi_reduction <add>, %79, %cst_34 [2] : vector<2x8x8xf32> to vector<2x8xf32>
    %81 = vector.shape_cast %80 : vector<2x8xf32> to vector<2x8x1xf32>
    %82 = tpu.reciprocal %81 {approx = true} : vector<2x8x1xf32> -> vector<2x8x1xf32>
    %83 = vector.broadcast %82 : vector<2x8x1xf32> to vector<2x8x8xf32>
    %84 = arith.mulf %79, %83 : vector<2x8x8xf32>
    %85 = arith.truncf %84 : vector<2x8x8xf32> to vector<2x8x8xbf16>
    "tpu.trace_start"() <{level = 10 : i32, message = "bqk,bkd->bqd"}> : () -> ()
    %cst_35 = arith.constant dense<0.000000e+00> : vector<2x8x8xf32>
    %86 = tpu.matmul %85, %71, %cst_35 {dimension_numbers = #tpu.dot_dimension_numbers<[2], [1], [1], [2], [0, 0, 0, 1, 1, 2], [0], [0]>} : vector<2x8x8xbf16>, vector<2x8x8xbf16>, vector<2x8x8xf32> -> vector<2x8x8xf32>
    "tpu.trace_stop"() : () -> ()
    %87 = arith.truncf %86 : vector<2x8x8xf32> to vector<2x8x8xbf16>
    %88 = vector.shape_cast %87 : vector<2x8x8xbf16> to vector<16x8xbf16>
    %c0_36 = arith.constant 0 : index
    %c8 = arith.constant 8 : index
    %c0_37 = arith.constant 0 : index
    %89 = vector.load %arg8[%c0_36, %c8, %c0_37] : memref<1x32x32xbf16, #tpu.memory_space<vmem>>, vector<1x8x32xbf16>
    %90 = vector.shape_cast %89 : vector<1x8x32xbf16> to vector<8x32xbf16>
    %cst_38 = arith.constant dense<0.000000e+00> : vector<16x32xf32>
    %91 = tpu.matmul %88, %90, %cst_38 {dimension_numbers = #tpu.dot_dimension_numbers<[1], [0], [0], [1], [0, 0, 1, 1], [], []>} : vector<16x8xbf16>, vector<8x32xbf16>, vector<16x32xf32> -> vector<16x32xf32>
    %92 = arith.addf %68, %91 : vector<16x32xf32>
    %93 = vector.extract_strided_slice %43 {offsets = [0, 0, 16], sizes = [2, 8, 8], strides = [1, 1, 1]} : vector<2x8x96xbf16> to vector<2x8x8xbf16>
    %94 = vector.extract_strided_slice %43 {offsets = [0, 0, 48], sizes = [2, 8, 8], strides = [1, 1, 1]} : vector<2x8x96xbf16> to vector<2x8x8xbf16>
    %95 = vector.extract_strided_slice %43 {offsets = [0, 0, 80], sizes = [2, 8, 8], strides = [1, 1, 1]} : vector<2x8x96xbf16> to vector<2x8x8xbf16>
    "tpu.trace_start"() <{level = 10 : i32, message = "bqd,bkd->bqk"}> : () -> ()
    %cst_39 = arith.constant dense<0.000000e+00> : vector<2x8x8xf32>
    %96 = tpu.matmul %93, %94, %cst_39 {dimension_numbers = #tpu.dot_dimension_numbers<[2], [2], [1], [1], [0, 0, 0, 1, 1, 1], [0], [0]>} : vector<2x8x8xbf16>, vector<2x8x8xbf16>, vector<2x8x8xf32> -> vector<2x8x8xf32>
    "tpu.trace_stop"() : () -> ()
    %97 = vector.broadcast %4 : vector<2x1x8xf32> to vector<2x8x8xf32>
    %98 = arith.addf %96, %97 : vector<2x8x8xf32>
    %cst_40 = arith.constant dense<0xFF800000> : vector<2x8xf32>
    %99 = vector.multi_reduction <maximumf>, %98, %cst_40 [2] : vector<2x8x8xf32> to vector<2x8xf32>
    %100 = vector.shape_cast %99 : vector<2x8xf32> to vector<2x8x1xf32>
    %101 = vector.broadcast %100 : vector<2x8x1xf32> to vector<2x8x8xf32>
    %102 = arith.subf %98, %101 : vector<2x8x8xf32>
    %103 = math.exp %102 : vector<2x8x8xf32>
    %cst_41 = arith.constant dense<0.000000e+00> : vector<2x8xf32>
    %104 = vector.multi_reduction <add>, %103, %cst_41 [2] : vector<2x8x8xf32> to vector<2x8xf32>
    %105 = vector.shape_cast %104 : vector<2x8xf32> to vector<2x8x1xf32>
    %106 = tpu.reciprocal %105 {approx = true} : vector<2x8x1xf32> -> vector<2x8x1xf32>
    %107 = vector.broadcast %106 : vector<2x8x1xf32> to vector<2x8x8xf32>
    %108 = arith.mulf %103, %107 : vector<2x8x8xf32>
    %109 = arith.truncf %108 : vector<2x8x8xf32> to vector<2x8x8xbf16>
    "tpu.trace_start"() <{level = 10 : i32, message = "bqk,bkd->bqd"}> : () -> ()
    %cst_42 = arith.constant dense<0.000000e+00> : vector<2x8x8xf32>
    %110 = tpu.matmul %109, %95, %cst_42 {dimension_numbers = #tpu.dot_dimension_numbers<[2], [1], [1], [2], [0, 0, 0, 1, 1, 2], [0], [0]>} : vector<2x8x8xbf16>, vector<2x8x8xbf16>, vector<2x8x8xf32> -> vector<2x8x8xf32>
    "tpu.trace_stop"() : () -> ()
    %111 = arith.truncf %110 : vector<2x8x8xf32> to vector<2x8x8xbf16>
    %112 = vector.shape_cast %111 : vector<2x8x8xbf16> to vector<16x8xbf16>
    %c0_43 = arith.constant 0 : index
    %c16 = arith.constant 16 : index
    %c0_44 = arith.constant 0 : index
    %113 = vector.load %arg8[%c0_43, %c16, %c0_44] : memref<1x32x32xbf16, #tpu.memory_space<vmem>>, vector<1x8x32xbf16>
    %114 = vector.shape_cast %113 : vector<1x8x32xbf16> to vector<8x32xbf16>
    %cst_45 = arith.constant dense<0.000000e+00> : vector<16x32xf32>
    %115 = tpu.matmul %112, %114, %cst_45 {dimension_numbers = #tpu.dot_dimension_numbers<[1], [0], [0], [1], [0, 0, 1, 1], [], []>} : vector<16x8xbf16>, vector<8x32xbf16>, vector<16x32xf32> -> vector<16x32xf32>
    %116 = arith.addf %92, %115 : vector<16x32xf32>
    %117 = vector.extract_strided_slice %43 {offsets = [0, 0, 24], sizes = [2, 8, 8], strides = [1, 1, 1]} : vector<2x8x96xbf16> to vector<2x8x8xbf16>
    %118 = vector.extract_strided_slice %43 {offsets = [0, 0, 56], sizes = [2, 8, 8], strides = [1, 1, 1]} : vector<2x8x96xbf16> to vector<2x8x8xbf16>
    %119 = vector.extract_strided_slice %43 {offsets = [0, 0, 88], sizes = [2, 8, 8], strides = [1, 1, 1]} : vector<2x8x96xbf16> to vector<2x8x8xbf16>
    "tpu.trace_start"() <{level = 10 : i32, message = "bqd,bkd->bqk"}> : () -> ()
    %cst_46 = arith.constant dense<0.000000e+00> : vector<2x8x8xf32>
    %120 = tpu.matmul %117, %118, %cst_46 {dimension_numbers = #tpu.dot_dimension_numbers<[2], [2], [1], [1], [0, 0, 0, 1, 1, 1], [0], [0]>} : vector<2x8x8xbf16>, vector<2x8x8xbf16>, vector<2x8x8xf32> -> vector<2x8x8xf32>
    "tpu.trace_stop"() : () -> ()
    %121 = vector.broadcast %4 : vector<2x1x8xf32> to vector<2x8x8xf32>
    %122 = arith.addf %120, %121 : vector<2x8x8xf32>
    %cst_47 = arith.constant dense<0xFF800000> : vector<2x8xf32>
    %123 = vector.multi_reduction <maximumf>, %122, %cst_47 [2] : vector<2x8x8xf32> to vector<2x8xf32>
    %124 = vector.shape_cast %123 : vector<2x8xf32> to vector<2x8x1xf32>
    %125 = vector.broadcast %124 : vector<2x8x1xf32> to vector<2x8x8xf32>
    %126 = arith.subf %122, %125 : vector<2x8x8xf32>
    %127 = math.exp %126 : vector<2x8x8xf32>
    %cst_48 = arith.constant dense<0.000000e+00> : vector<2x8xf32>
    %128 = vector.multi_reduction <add>, %127, %cst_48 [2] : vector<2x8x8xf32> to vector<2x8xf32>
    %129 = vector.shape_cast %128 : vector<2x8xf32> to vector<2x8x1xf32>
    %130 = tpu.reciprocal %129 {approx = true} : vector<2x8x1xf32> -> vector<2x8x1xf32>
    %131 = vector.broadcast %130 : vector<2x8x1xf32> to vector<2x8x8xf32>
    %132 = arith.mulf %127, %131 : vector<2x8x8xf32>
    %133 = arith.truncf %132 : vector<2x8x8xf32> to vector<2x8x8xbf16>
    "tpu.trace_start"() <{level = 10 : i32, message = "bqk,bkd->bqd"}> : () -> ()
    %cst_49 = arith.constant dense<0.000000e+00> : vector<2x8x8xf32>
    %134 = tpu.matmul %133, %119, %cst_49 {dimension_numbers = #tpu.dot_dimension_numbers<[2], [1], [1], [2], [0, 0, 0, 1, 1, 2], [0], [0]>} : vector<2x8x8xbf16>, vector<2x8x8xbf16>, vector<2x8x8xf32> -> vector<2x8x8xf32>
    "tpu.trace_stop"() : () -> ()
    %135 = arith.truncf %134 : vector<2x8x8xf32> to vector<2x8x8xbf16>
    %136 = vector.shape_cast %135 : vector<2x8x8xbf16> to vector<16x8xbf16>
    %c0_50 = arith.constant 0 : index
    %c24 = arith.constant 24 : index
    %c0_51 = arith.constant 0 : index
    %137 = vector.load %arg8[%c0_50, %c24, %c0_51] : memref<1x32x32xbf16, #tpu.memory_space<vmem>>, vector<1x8x32xbf16>
    %138 = vector.shape_cast %137 : vector<1x8x32xbf16> to vector<8x32xbf16>
    %cst_52 = arith.constant dense<0.000000e+00> : vector<16x32xf32>
    %139 = tpu.matmul %136, %138, %cst_52 {dimension_numbers = #tpu.dot_dimension_numbers<[1], [0], [0], [1], [0, 0, 1, 1], [], []>} : vector<16x8xbf16>, vector<8x32xbf16>, vector<16x32xf32> -> vector<16x32xf32>
    %140 = arith.addf %116, %139 : vector<16x32xf32>
    %c0_53 = arith.constant 0 : index
    %c0_54 = arith.constant 0 : index
    %c0_55 = arith.constant 0 : index
    %141 = vector.load %arg9[%c0_53, %c0_54, %c0_55] : memref<1x1x32xf32, #tpu.memory_space<vmem>>, vector<1x1x32xf32>
    %142 = vector.shape_cast %141 : vector<1x1x32xf32> to vector<1x32xf32>
    %143 = vector.broadcast %142 : vector<1x32xf32> to vector<16x32xf32>
    %144 = arith.addf %140, %143 : vector<16x32xf32>
    %145 = vector.shape_cast %144 : vector<16x32xf32> to vector<2x8x32xf32>
    %146 = arith.addf %3, %145 : vector<2x8x32xf32>
    %c0_56 = arith.constant 0 : index
    %c0_57 = arith.constant 0 : index
    %c0_58 = arith.constant 0 : index
    %147 = vector.load %arg10[%c0_56, %c0_57, %c0_58] : memref<1x1x32xf32, #tpu.memory_space<vmem>>, vector<1x1x32xf32>
    %148 = vector.shape_cast %147 : vector<1x1x32xf32> to vector<1x32xf32>
    %c0_59 = arith.constant 0 : index
    %c0_60 = arith.constant 0 : index
    %c0_61 = arith.constant 0 : index
    %149 = vector.load %arg11[%c0_59, %c0_60, %c0_61] : memref<1x1x32xf32, #tpu.memory_space<vmem>>, vector<1x1x32xf32>
    %150 = vector.shape_cast %149 : vector<1x1x32xf32> to vector<1x32xf32>
    %cst_62 = arith.constant dense<0.000000e+00> : vector<2x8xf32>
    %151 = vector.multi_reduction <add>, %146, %cst_62 [2] : vector<2x8x32xf32> to vector<2x8xf32>
    %152 = vector.shape_cast %151 : vector<2x8xf32> to vector<2x8x1xf32>
    %cst_63 = arith.constant 3.200000e+01 : f32
    %153 = vector.broadcast %cst_63 : f32 to vector<2x8x1xf32>
    %154 = arith.divf %152, %153 : vector<2x8x1xf32>
    %155 = vector.broadcast %154 : vector<2x8x1xf32> to vector<2x8x32xf32>
    %156 = arith.subf %146, %155 : vector<2x8x32xf32>
    %157 = arith.mulf %156, %156 : vector<2x8x32xf32>
    %cst_64 = arith.constant dense<0.000000e+00> : vector<2x8xf32>
    %158 = vector.multi_reduction <add>, %157, %cst_64 [2] : vector<2x8x32xf32> to vector<2x8xf32>
    %159 = vector.shape_cast %158 : vector<2x8xf32> to vector<2x8x1xf32>
    %cst_65 = arith.constant 3.200000e+01 : f32
    %160 = vector.broadcast %cst_65 : f32 to vector<2x8x1xf32>
    %161 = arith.divf %159, %160 : vector<2x8x1xf32>
    %162 = vector.broadcast %154 : vector<2x8x1xf32> to vector<2x8x32xf32>
    %163 = arith.subf %146, %162 : vector<2x8x32xf32>
    %cst_66 = arith.constant 9.99999974E-6 : f32
    %164 = vector.broadcast %cst_66 : f32 to vector<2x8x1xf32>
    %165 = arith.addf %161, %164 : vector<2x8x1xf32>
    %166 = math.rsqrt %165 : vector<2x8x1xf32>
    %167 = vector.broadcast %166 : vector<2x8x1xf32> to vector<2x8x32xf32>
    %168 = arith.mulf %163, %167 : vector<2x8x32xf32>
    %169 = vector.shape_cast %148 : vector<1x32xf32> to vector<1x1x32xf32>
    %170 = vector.broadcast %169 : vector<1x1x32xf32> to vector<2x8x32xf32>
    %171 = arith.mulf %168, %170 : vector<2x8x32xf32>
    %172 = vector.shape_cast %150 : vector<1x32xf32> to vector<1x1x32xf32>
    %173 = vector.broadcast %172 : vector<1x1x32xf32> to vector<2x8x32xf32>
    %174 = arith.addf %171, %173 : vector<2x8x32xf32>
    %175 = arith.truncf %174 : vector<2x8x32xf32> to vector<2x8x32xbf16>
    %176 = vector.shape_cast %175 : vector<2x8x32xbf16> to vector<16x32xbf16>
    %c0_67 = arith.constant 0 : index
    %c0_68 = arith.constant 0 : index
    %c0_69 = arith.constant 0 : index
    %177 = vector.load %arg12[%c0_67, %c0_68, %c0_69] : memref<1x32x64xbf16, #tpu.memory_space<vmem>>, vector<1x32x64xbf16>
    %178 = vector.shape_cast %177 : vector<1x32x64xbf16> to vector<32x64xbf16>
    %cst_70 = arith.constant dense<0.000000e+00> : vector<16x64xf32>
    %179 = tpu.matmul %176, %178, %cst_70 {dimension_numbers = #tpu.dot_dimension_numbers<[1], [0], [0], [1], [0, 0, 1, 1], [], []>} : vector<16x32xbf16>, vector<32x64xbf16>, vector<16x64xf32> -> vector<16x64xf32>
    %c0_71 = arith.constant 0 : index
    %c0_72 = arith.constant 0 : index
    %c0_73 = arith.constant 0 : index
    %180 = vector.load %arg13[%c0_71, %c0_72, %c0_73] : memref<1x1x64xf32, #tpu.memory_space<vmem>>, vector<1x1x64xf32>
    %181 = vector.shape_cast %180 : vector<1x1x64xf32> to vector<1x64xf32>
    %182 = vector.broadcast %181 : vector<1x64xf32> to vector<16x64xf32>
    %183 = arith.addf %179, %182 : vector<16x64xf32>
    %cst_74 = arith.constant 5.000000e-01 : f32
    %184 = vector.broadcast %cst_74 : f32 to vector<16x64xf32>
    %185 = arith.mulf %184, %183 : vector<16x64xf32>
    %cst_75 = arith.constant 0.707106769 : f32
    %186 = vector.broadcast %cst_75 : f32 to vector<16x64xf32>
    %187 = arith.mulf %183, %186 : vector<16x64xf32>
    %188 = math.erf %187 : vector<16x64xf32>
    %cst_76 = arith.constant 1.000000e+00 : f32
    %189 = vector.broadcast %cst_76 : f32 to vector<16x64xf32>
    %190 = arith.addf %189, %188 : vector<16x64xf32>
    %191 = arith.mulf %185, %190 : vector<16x64xf32>
    %192 = arith.truncf %191 : vector<16x64xf32> to vector<16x64xbf16>
    %c0_77 = arith.constant 0 : index
    %c0_78 = arith.constant 0 : index
    %c0_79 = arith.constant 0 : index
    %193 = vector.load %arg14[%c0_77, %c0_78, %c0_79] : memref<1x64x32xbf16, #tpu.memory_space<vmem>>, vector<1x64x32xbf16>
    %194 = vector.shape_cast %193 : vector<1x64x32xbf16> to vector<64x32xbf16>
    %cst_80 = arith.constant dense<0.000000e+00> : vector<16x32xf32>
    %195 = tpu.matmul %192, %194, %cst_80 {dimension_numbers = #tpu.dot_dimension_numbers<[1], [0], [0], [1], [0, 0, 1, 1], [], []>} : vector<16x64xbf16>, vector<64x32xbf16>, vector<16x32xf32> -> vector<16x32xf32>
    %c0_81 = arith.constant 0 : index
    %c0_82 = arith.constant 0 : index
    %c0_83 = arith.constant 0 : index
    %196 = vector.load %arg15[%c0_81, %c0_82, %c0_83] : memref<1x1x32xf32, #tpu.memory_space<vmem>>, vector<1x1x32xf32>
    %197 = vector.shape_cast %196 : vector<1x1x32xf32> to vector<1x32xf32>
    %198 = vector.broadcast %197 : vector<1x32xf32> to vector<16x32xf32>
    %199 = arith.addf %195, %198 : vector<16x32xf32>
    %200 = vector.shape_cast %199 : vector<16x32xf32> to vector<2x8x32xf32>
    %201 = arith.addf %146, %200 : vector<2x8x32xf32>
    %c0_84 = arith.constant 0 : index
    %c0_85 = arith.constant 0 : index
    %c0_86 = arith.constant 0 : index
    %202 = vector.load %arg17[%c0_84, %c0_85, %c0_86] : memref<2x8x32xf32, #tpu.memory_space<vmem>>, vector<2x8x32xf32>
    tpu.vector_store %arg17[%c0_84, %c0_85, %c0_86], %201 {strides = array<i32>} : memref<2x8x32xf32, #tpu.memory_space<vmem>>, vector<2x8x32xf32>,
    %c1_i32 = arith.constant 1 : i32
    %203 = arith.cmpi eq, %arg1, %c1_i32 : i32
    %204 = arith.extui %203 : i1 to i32
    %c0_i32_87 = arith.constant 0 : i32
    %205 = arith.cmpi ne, %204, %c0_i32_87 : i32
    scf.if %205 {
      %c0_88 = arith.constant 0 : index
      %c0_89 = arith.constant 0 : index
      %c0_90 = arith.constant 0 : index
      %206 = vector.load %arg16[%c0_88, %c0_89, %c0_90] : memref<2x8x32xf32, #tpu.memory_space<vmem>>, vector<2x8x32xf32>
      tpu.vector_store %arg16[%c0_88, %c0_89, %c0_90], %201 {strides = array<i32>} : memref<2x8x32xf32, #tpu.memory_space<vmem>>, vector<2x8x32xf32>,
    } else {
    }
    return
  }
  func.func @transform_0(%arg0: i32, %arg1: i32) -> (i32, i32, i32) {
    %c0_i32 = arith.constant 0 : i32
    %c0_i32_0 = arith.constant 0 : i32
    %c0_i32_1 = arith.constant 0 : i32
    return %arg0, %c0_i32, %c0_i32_0 : i32, i32, i32
  }
  func.func @transform_1(%arg0: i32, %arg1: i32) -> (i32, i32, i32) {
    %c0_i32 = arith.constant 0 : i32
    %c0_i32_0 = arith.constant 0 : i32
    %c0_i32_1 = arith.constant 0 : i32
    return %arg0, %c0_i32, %c0_i32_0 : i32, i32, i32
  }
  func.func @transform_2(%arg0: i32, %arg1: i32) -> (i32, i32, i32) {
    %c0_i32 = arith.constant 0 : i32
    %c0_i32_0 = arith.constant 0 : i32
    %c0_i32_1 = arith.constant 0 : i32
    return %arg1, %c0_i32, %c0_i32_0 : i32, i32, i32
  }
  func.func @transform_3(%arg0: i32, %arg1: i32) -> (i32, i32, i32) {
    %c0_i32 = arith.constant 0 : i32
    %c0_i32_0 = arith.constant 0 : i32
    %c0_i32_1 = arith.constant 0 : i32
    return %arg1, %c0_i32, %c0_i32_0 : i32, i32, i32
  }
  func.func @transform_4(%arg0: i32, %arg1: i32) -> (i32, i32, i32) {
    %c0_i32 = arith.constant 0 : i32
    %c0_i32_0 = arith.constant 0 : i32
    %c0_i32_1 = arith.constant 0 : i32
    return %arg1, %c0_i32, %c0_i32_0 : i32, i32, i32
  }
  func.func @transform_5(%arg0: i32, %arg1: i32) -> (i32, i32, i32) {
    %c0_i32 = arith.constant 0 : i32
    %c0_i32_0 = arith.constant 0 : i32
    %c0_i32_1 = arith.constant 0 : i32
    return %arg1, %c0_i32, %c0_i32_0 : i32, i32, i32
  }
  func.func @transform_6(%arg0: i32, %arg1: i32) -> (i32, i32, i32) {
    %c0_i32 = arith.constant 0 : i32
    %c0_i32_0 = arith.constant 0 : i32
    %c0_i32_1 = arith.constant 0 : i32
    return %arg1, %c0_i32, %c0_i32_0 : i32, i32, i32
  }
  func.func @transform_7(%arg0: i32, %arg1: i32) -> (i32, i32, i32) {
    %c0_i32 = arith.constant 0 : i32
    %c0_i32_0 = arith.constant 0 : i32
    %c0_i32_1 = arith.constant 0 : i32
    return %arg1, %c0_i32, %c0_i32_0 : i32, i32, i32
  }
  func.func @transform_8(%arg0: i32, %arg1: i32) -> (i32, i32, i32) {
    %c0_i32 = arith.constant 0 : i32
    %c0_i32_0 = arith.constant 0 : i32
    %c0_i32_1 = arith.constant 0 : i32
    return %arg1, %c0_i32, %c0_i32_0 : i32, i32, i32
  }
  func.func @transform_9(%arg0: i32, %arg1: i32) -> (i32, i32, i32) {
    %c0_i32 = arith.constant 0 : i32
    %c0_i32_0 = arith.constant 0 : i32
    %c0_i32_1 = arith.constant 0 : i32
    return %arg1, %c0_i32, %c0_i32_0 : i32, i32, i32
  }
  func.func @transform_10(%arg0: i32, %arg1: i32) -> (i32, i32, i32) {
    %c0_i32 = arith.constant 0 : i32
    %c0_i32_0 = arith.constant 0 : i32
    %c0_i32_1 = arith.constant 0 : i32
    return %arg1, %c0_i32, %c0_i32_0 : i32, i32, i32
  }
  func.func @transform_11(%arg0: i32, %arg1: i32) -> (i32, i32, i32) {
    %c0_i32 = arith.constant 0 : i32
    %c0_i32_0 = arith.constant 0 : i32
    %c0_i32_1 = arith.constant 0 : i32
    return %arg1, %c0_i32, %c0_i32_0 : i32, i32, i32
  }
  func.func @transform_12(%arg0: i32, %arg1: i32) -> (i32, i32, i32) {
    %c0_i32 = arith.constant 0 : i32
    %c0_i32_0 = arith.constant 0 : i32
    %c0_i32_1 = arith.constant 0 : i32
    return %arg1, %c0_i32, %c0_i32_0 : i32, i32, i32
  }
  func.func @transform_13(%arg0: i32, %arg1: i32) -> (i32, i32, i32) {
    %c0_i32 = arith.constant 0 : i32
    %c0_i32_0 = arith.constant 0 : i32
    %c0_i32_1 = arith.constant 0 : i32
    return %arg1, %c0_i32, %c0_i32_0 : i32, i32, i32
  }
  func.func @transform_14(%arg0: i32, %arg1: i32) -> (i32, i32, i32) {
    %c0_i32 = arith.constant 0 : i32
    %c0_i32_0 = arith.constant 0 : i32
    %c0_i32_1 = arith.constant 0 : i32
    return %arg0, %c0_i32, %c0_i32_0 : i32, i32, i32
  }
}

</mosaic_0001>

<llo_original>
// kernel: tpu_custom_call.1
$region0: #{tpu_custom_call.1}
  #allocation0 [shape = 'u32[]', space=smem, size = 0x4, offset = 0x4, fixed_abs, tag = 'smem constant byte address 0x4 - core index']
  #allocation1 [shape = 'u32[72,128]{1,0:T(1,128)}', space=vmem, size = 0x9000, scoped, tag = 'internal scratch']
  #allocation2 [shape = 'f32[2,8,32]{2,1,0:T(8,128)}', space=vmem, size = 0x2000, scoped, tag = 'scratch operand']
  %s0 = inlined_call_operand.hbm [shape: f32[2,8,32], index: 0, kind: input, shape index: {}]
  %s1 = inlined_call_operand.hbm [shape: f32[2,1,8], index: 1, kind: input, shape index: {}]
  %s2 = inlined_call_operand.hbm [shape: f32[2,1,32], index: 2, kind: input, shape index: {}]
  %s3 = inlined_call_operand.hbm [shape: f32[2,1,32], index: 3, kind: input, shape index: {}]
  %s4 = inlined_call_operand.vmem [shape: bf16[2,32,96], index: 4, kind: input, shape index: {}]
  %s5 = inlined_call_operand.vmem [shape: f32[2,1,96], index: 5, kind: input, shape index: {}]
  %s6 = inlined_call_operand.vmem [shape: bf16[2,32,32], index: 6, kind: input, shape index: {}]
  %s7 = inlined_call_operand.vmem [shape: f32[2,1,32], index: 7, kind: input, shape index: {}]
  %s8 = inlined_call_operand.vmem [shape: f32[2,1,32], index: 8, kind: input, shape index: {}]
  %s9 = inlined_call_operand.hbm [shape: f32[2,1,32], index: 9, kind: input, shape index: {}]
  %s10 = inlined_call_operand.vmem [shape: bf16[2,32,64], index: 10, kind: input, shape index: {}]
  %s11 = inlined_call_operand.vmem [shape: f32[2,1,64], index: 11, kind: input, shape index: {}]
  %s12 = inlined_call_operand.vmem [shape: bf16[2,64,32], index: 12, kind: input, shape index: {}]
  %s13 = inlined_call_operand.vmem [shape: f32[2,1,32], index: 13, kind: input, shape index: {}]
  %s14 = inlined_call_operand.hbm [shape: f32[2,8,32], index: 14, kind: output, shape index: {}]
  %s15 = sld [smem:[#allocation0]]
  $region117: #{tpu_custom_call.1} parent=0
    _
  %s17 = ssub.s32 1, %s15
  %s18 = scalar_select 0, %s17, %s15
  $region1: #{tpu_custom_call.1} parent=0
    #allocation3 [shape = 'u8[8192]{0}', space=vmem, size = 0x2000, scoped, tag = 'input window, operand 0, single buffered']
    #allocation4 [shape = 's32[2]{0}', space=sflag, size = 0x8, scoped, tag = 'scoped memory for tpu_custom_call.1']
    #allocation5 [shape = 's32[2]{0}', space=sflag, size = 0x8, scoped, tag = 'scoped memory for tpu_custom_call.1']
    #allocation6 [shape = 'u8[1024]{0}', space=vmem, size = 0x400, scoped, tag = 'input window, operand 1, single buffered']
    #allocation7 [shape = 's32[1]{0}', space=sflag, size = 0x4, scoped, tag = 'scoped memory for tpu_custom_call.1']
    #allocation8 [shape = 'u8[1024]{0}', space=vmem, size = 0x400, scoped, tag = 'input window, operand 2']
    #allocation9 [shape = 'u8[1024]{0}', space=vmem, size = 0x400, scoped, tag = 'input window, operand 3']
    #allocation10 [shape = 'u8[1024]{0}', space=vmem, size = 0x400, scoped, tag = 'input window, operand 9']
    #allocation11 [shape = 'u8[8192]{0}', space=vmem, size = 0x2000, scoped, tag = 'output window, operand 0, single buffered']
    %19 = vsyncpa [#allocation4], 0
    %20 = vsyncpa [#allocation7], 0
    %21 = vsyncpa [#allocation5], 0
    loop: start=0, step=1, limit=4
    $region2: #{tpu_custom_call.1} parent=1 // loop_pre_header
      _
    $region3: #{tpu_custom_call.1} parent=1 // loop_header
      %s23 = sphi 0, %s27
      %p24 = scmp.ge.s32.totalorder %s23, 4
      %s30 = sphi 0, %s42
      %s31 = sphi 0, %s38
      %s32 = sphi 0, %s30
      %s33 = sphi 0, %s31
      %s34 = sphi 0, %s32
      %s35 = sphi 0, %s33
      %s45 = sphi 0, %s47
      %s48 = sphi 0, %s45
      %s49 = sphi 0, %s48
      %s65 = sphi 0, %s49
      %s71 = sphi 0, %s73
      %s74 = sphi 0, %s71
      %s75 = sphi 0, %s74
      %s91 = sphi 0, %s75
      %s97 = sphi 0, %s99
      %s100 = sphi 0, %s97
      %s101 = sphi 0, %s100
      %s117 = sphi 0, %s101
      %s123 = sphi 0, %s125
      %s126 = sphi 0, %s123
      %s127 = sphi 0, %s126
      %s143 = sphi 0, %s127
      %s149 = sphi 0, %s151
      %s152 = sphi 0, %s149
      %s153 = sphi 0, %s152
      %s169 = sphi 0, %s153
      %s175 = sphi 0, %s177
      %s178 = sphi 0, %s175
      %s179 = sphi 0, %s178
      %s195 = sphi 0, %s179
      %s201 = sphi 0, %s203
      %s204 = sphi 0, %s201
      %s205 = sphi 0, %s204
      %s221 = sphi 0, %s205
      %s227 = sphi 0, %s229
      %s230 = sphi 0, %s227
      %s231 = sphi 0, %s230
      %s247 = sphi 0, %s231
      %s253 = sphi 0, %s255
      %s256 = sphi 0, %s253
      %s257 = sphi 0, %s256
      %s273 = sphi 0, %s257
      %s279 = sphi 0, %s281
      %s282 = sphi 0, %s279
      %s283 = sphi 0, %s282
      %s299 = sphi 0, %s283
      %s305 = sphi 0, %s307
      %s308 = sphi 0, %s305
      %s309 = sphi 0, %s308
      %s325 = sphi 0, %s309
      %s331 = sphi 0, %s333
      %s334 = sphi 0, %s331
      %s335 = sphi 0, %s334
      %s351 = sphi 0, %s335
      %s357 = sphi 0, %s359
      %s360 = sphi 0, %s357
      %s361 = sphi 0, %s360
      %s377 = sphi 0, %s361
      %s383 = sphi 0, %s385
      %s386 = sphi 0, %s383
      %s387 = sphi 0, %s386
      %s403 = sphi 0, %s387
      %s409 = sphi 0, %s411
      %s412 = sphi 0, %s409
      %s413 = sphi 0, %s412
      %s429 = sphi 0, %s413
    $region4: #{tpu_custom_call.1} parent=1 // loop_header_branch
      %26 = sbr.rel (%p24) target = $region8
    $region5: #{tpu_custom_call.1} parent=1 // loop_body
      %s28 = ssub.s32 %s23, 1
      %s29 = ssub.s32 %s23, 2
      %s36 = sadd.s32 1, %s31
      %p37 = scmp.ge.s32.totalorder %s36, 2
      %s38 = scalar_select %p37, 0, %s36
      %s39 = sadd.s32 1, %s30
      %s40 = scalar_select %p37, %s39, %s30
      %p41 = scmp.ge.s32.totalorder %s40, 1
      %s42 = scalar_select %p41, 0, %s40
      %s43 = ssub.s32 %s30, %s42
      %p44 = scmp.eq.s32.totalorder %s43, 0
      %s46 = sadd.s32 %s45, 1
      %s47 = scalar_select %p44, %s45, %s46
      %p50 = pneg %p44
      %p51 = scmp.eq.s32.totalorder %s23, 1
      %p52 = por %p50, %p51
      %p53 = scmp.ne.s32.totalorder %s45, %s48
      %p54 = scmp.eq.s32.totalorder %s23, 0
      %p55 = por %p53, %p54
      %p56 = scmp.ne.s32.totalorder %s45, %s48
      %p57 = scmp.eq.s32.totalorder %s28, 1
      %p58 = por %p56, %p57
      %p59 = scmp.ne.s32.totalorder %s48, %s49
      %p60 = scmp.eq.s32.totalorder %s28, 0
      %p61 = por %p59, %p60
      %p62 = scmp.ne.s32.totalorder %s48, %s49
      %p63 = scmp.eq.s32.totalorder %s29, 1
      %p64 = por %p62, %p63
      %p66 = scmp.ne.s32.totalorder %s49, %s65
      %p67 = scmp.eq.s32.totalorder %s29, 0
      %p68 = por %p66, %p67
      %s69 = ssub.s32 %s30, %s42
      %p70 = scmp.eq.s32.totalorder %s69, 0
      %s72 = sadd.s32 %s71, 1
      %s73 = scalar_select %p70, %s71, %s72
      %p76 = pneg %p70
      %p77 = scmp.eq.s32.totalorder %s23, 1
      %p78 = por %p76, %p77
      %p79 = scmp.ne.s32.totalorder %s71, %s74
      %p80 = scmp.eq.s32.totalorder %s23, 0
      %p81 = por %p79, %p80
      %p82 = scmp.ne.s32.totalorder %s71, %s74
      %p83 = scmp.eq.s32.totalorder %s28, 1
      %p84 = por %p82, %p83
      %p85 = scmp.ne.s32.totalorder %s74, %s75
      %p86 = scmp.eq.s32.totalorder %s28, 0
      %p87 = por %p85, %p86
      %p88 = scmp.ne.s32.totalorder %s74, %s75
      %p89 = scmp.eq.s32.totalorder %s29, 1
      %p90 = por %p88, %p89
      %p92 = scmp.ne.s32.totalorder %s75, %s91
      %p93 = scmp.eq.s32.totalorder %s29, 0
      %p94 = por %p92, %p93
      %s95 = ssub.s32 %s31, %s38
      %p96 = scmp.eq.s32.totalorder %s95, 0
      %s98 = sadd.s32 %s97, 1
      %s99 = scalar_select %p96, %s97, %s98
      %p102 = pneg %p96
      %p103 = scmp.eq.s32.totalorder %s23, 1
      %p104 = por %p102, %p103
      %p105 = scmp.ne.s32.totalorder %s97, %s100
      %p106 = scmp.eq.s32.totalorder %s23, 0
      %p107 = por %p105, %p106
      %p108 = scmp.ne.s32.totalorder %s97, %s100
      %p109 = scmp.eq.s32.totalorder %s28, 1
      %p110 = por %p108, %p109
      %p111 = scmp.ne.s32.totalorder %s100, %s101
      %p112 = scmp.eq.s32.totalorder %s28, 0
      %p113 = por %p111, %p112
      %p114 = scmp.ne.s32.totalorder %s100, %s101
      %p115 = scmp.eq.s32.totalorder %s29, 1
      %p116 = por %p114, %p115
      %p118 = scmp.ne.s32.totalorder %s101, %s117
      %p119 = scmp.eq.s32.totalorder %s29, 0
      %p120 = por %p118, %p119
      %s121 = ssub.s32 %s31, %s38
      %p122 = scmp.eq.s32.totalorder %s121, 0
      %s124 = sadd.s32 %s123, 1
      %s125 = scalar_select %p122, %s123, %s124
      %p128 = pneg %p122
      %p129 = scmp.eq.s32.totalorder %s23, 1
      %p130 = por %p128, %p129
      %p131 = scmp.ne.s32.totalorder %s123, %s126
      %p132 = scmp.eq.s32.totalorder %s23, 0
      %p133 = por %p131, %p132
      %p134 = scmp.ne.s32.totalorder %s123, %s126
      %p135 = scmp.eq.s32.totalorder %s28, 1
      %p136 = por %p134, %p135
      %p137 = scmp.ne.s32.totalorder %s126, %s127
      %p138 = scmp.eq.s32.totalorder %s28, 0
      %p139 = por %p137, %p138
      %p140 = scmp.ne.s32.totalorder %s126, %s127
      %p141 = scmp.eq.s32.totalorder %s29, 1
      %p142 = por %p140, %p141
      %p144 = scmp.ne.s32.totalorder %s127, %s143
      %p145 = scmp.eq.s32.totalorder %s29, 0
      %p146 = por %p144, %p145
      %s147 = ssub.s32 %s31, %s38
      %p148 = scmp.eq.s32.totalorder %s147, 0
      %s150 = sadd.s32 %s149, 1
      %s151 = scalar_select %p148, %s149, %s150
      %p154 = pneg %p148
      %p155 = scmp.eq.s32.totalorder %s23, 1
      %p156 = por %p154, %p155
      %p157 = scmp.ne.s32.totalorder %s149, %s152
      %p158 = scmp.eq.s32.totalorder %s23, 0
      %p159 = por %p157, %p158
      %p160 = scmp.ne.s32.totalorder %s149, %s152
      %p161 = scmp.eq.s32.totalorder %s28, 1
      %p162 = por %p160, %p161
      %p163 = scmp.ne.s32.totalorder %s152, %s153
      %p164 = scmp.eq.s32.totalorder %s28, 0
      %p165 = por %p163, %p164
      %p166 = scmp.ne.s32.totalorder %s152, %s153
      %p167 = scmp.eq.s32.totalorder %s29, 1
      %p168 = por %p166, %p167
      %p170 = scmp.ne.s32.totalorder %s153, %s169
      %p171 = scmp.eq.s32.totalorder %s29, 0
      %p172 = por %p170, %p171
      %s173 = ssub.s32 %s31, %s38
      %p174 = scmp.eq.s32.totalorder %s173, 0
      %s176 = sadd.s32 %s175, 1
      %s177 = scalar_select %p174, %s175, %s176
      %p180 = pneg %p174
      %p181 = scmp.eq.s32.totalorder %s23, 1
      %p182 = por %p180, %p181
      %p183 = scmp.ne.s32.totalorder %s175, %s178
      %p184 = scmp.eq.s32.totalorder %s23, 0
      %p185 = por %p183, %p184
      %p186 = scmp.ne.s32.totalorder %s175, %s178
      %p187 = scmp.eq.s32.totalorder %s28, 1
      %p188 = por %p186, %p187
      %p189 = scmp.ne.s32.totalorder %s178, %s179
      %p190 = scmp.eq.s32.totalorder %s28, 0
      %p191 = por %p189, %p190
      %p192 = scmp.ne.s32.totalorder %s178, %s179
      %p193 = scmp.eq.s32.totalorder %s29, 1
      %p194 = por %p192, %p193
      %p196 = scmp.ne.s32.totalorder %s179, %s195
      %p197 = scmp.eq.s32.totalorder %s29, 0
      %p198 = por %p196, %p197
      %s199 = ssub.s32 %s31, %s38
      %p200 = scmp.eq.s32.totalorder %s199, 0
      %s202 = sadd.s32 %s201, 1
      %s203 = scalar_select %p200, %s201, %s202
      %p206 = pneg %p200
      %p207 = scmp.eq.s32.totalorder %s23, 1
      %p208 = por %p206, %p207
      %p209 = scmp.ne.s32.totalorder %s201, %s204
      %p210 = scmp.eq.s32.totalorder %s23, 0
      %p211 = por %p209, %p210
      %p212 = scmp.ne.s32.totalorder %s201, %s204
      %p213 = scmp.eq.s32.totalorder %s28, 1
      %p214 = por %p212, %p213
      %p215 = scmp.ne.s32.totalorder %s204, %s205
      %p216 = scmp.eq.s32.totalorder %s28, 0
      %p217 = por %p215, %p216
      %p218 = scmp.ne.s32.totalorder %s204, %s205
      %p219 = scmp.eq.s32.totalorder %s29, 1
      %p220 = por %p218, %p219
      %p222 = scmp.ne.s32.totalorder %s205, %s221
      %p223 = scmp.eq.s32.totalorder %s29, 0
      %p224 = por %p222, %p223
      %s225 = ssub.s32 %s31, %s38
      %p226 = scmp.eq.s32.totalorder %s225, 0
      %s228 = sadd.s32 %s227, 1
      %s229 = scalar_select %p226, %s227, %s228
      %p232 = pneg %p226
      %p233 = scmp.eq.s32.totalorder %s23, 1
      %p234 = por %p232, %p233
      %p235 = scmp.ne.s32.totalorder %s227, %s230
      %p236 = scmp.eq.s32.totalorder %s23, 0
      %p237 = por %p235, %p236
      %p238 = scmp.ne.s32.totalorder %s227, %s230
      %p239 = scmp.eq.s32.totalorder %s28, 1
      %p240 = por %p238, %p239
      %p241 = scmp.ne.s32.totalorder %s230, %s231
      %p242 = scmp.eq.s32.totalorder %s28, 0
      %p243 = por %p241, %p242
      %p244 = scmp.ne.s32.totalorder %s230, %s231
      %p245 = scmp.eq.s32.totalorder %s29, 1
      %p246 = por %p244, %p245
      %p248 = scmp.ne.s32.totalorder %s231, %s247
      %p249 = scmp.eq.s32.totalorder %s29, 0
      %p250 = por %p248, %p249
      %s251 = ssub.s32 %s31, %s38
      %p252 = scmp.eq.s32.totalorder %s251, 0
      %s254 = sadd.s32 %s253, 1
      %s255 = scalar_select %p252, %s253, %s254
      %p258 = pneg %p252
      %p259 = scmp.eq.s32.totalorder %s23, 1
      %p260 = por %p258, %p259
      %p261 = scmp.ne.s32.totalorder %s253, %s256
      %p262 = scmp.eq.s32.totalorder %s23, 0
      %p263 = por %p261, %p262
      %p264 = scmp.ne.s32.totalorder %s253, %s256
      %p265 = scmp.eq.s32.totalorder %s28, 1
      %p266 = por %p264, %p265
      %p267 = scmp.ne.s32.totalorder %s256, %s257
      %p268 = scmp.eq.s32.totalorder %s28, 0
      %p269 = por %p267, %p268
      %p270 = scmp.ne.s32.totalorder %s256, %s257
      %p271 = scmp.eq.s32.totalorder %s29, 1
      %p272 = por %p270, %p271
      %p274 = scmp.ne.s32.totalorder %s257, %s273
      %p275 = scmp.eq.s32.totalorder %s29, 0
      %p276 = por %p274, %p275
      %s277 = ssub.s32 %s31, %s38
      %p278 = scmp.eq.s32.totalorder %s277, 0
      %s280 = sadd.s32 %s279, 1
      %s281 = scalar_select %p278, %s279, %s280
      %p284 = pneg %p278
      %p285 = scmp.eq.s32.totalorder %s23, 1
      %p286 = por %p284, %p285
      %p287 = scmp.ne.s32.totalorder %s279, %s282
      %p288 = scmp.eq.s32.totalorder %s23, 0
      %p289 = por %p287, %p288
      %p290 = scmp.ne.s32.totalorder %s279, %s282
      %p291 = scmp.eq.s32.totalorder %s28, 1
      %p292 = por %p290, %p291
      %p293 = scmp.ne.s32.totalorder %s282, %s283
      %p294 = scmp.eq.s32.totalorder %s28, 0
      %p295 = por %p293, %p294
      %p296 = scmp.ne.s32.totalorder %s282, %s283
      %p297 = scmp.eq.s32.totalorder %s29, 1
      %p298 = por %p296, %p297
      %p300 = scmp.ne.s32.totalorder %s283, %s299
      %p301 = scmp.eq.s32.totalorder %s29, 0
      %p302 = por %p300, %p301
      %s303 = ssub.s32 %s31, %s38
      %p304 = scmp.eq.s32.totalorder %s303, 0
      %s306 = sadd.s32 %s305, 1
      %s307 = scalar_select %p304, %s305, %s306
      %p310 = pneg %p304
      %p311 = scmp.eq.s32.totalorder %s23, 1
      %p312 = por %p310, %p311
      %p313 = scmp.ne.s32.totalorder %s305, %s308
      %p314 = scmp.eq.s32.totalorder %s23, 0
      %p315 = por %p313, %p314
      %p316 = scmp.ne.s32.totalorder %s305, %s308
      %p317 = scmp.eq.s32.totalorder %s28, 1
      %p318 = por %p316, %p317
      %p319 = scmp.ne.s32.totalorder %s308, %s309
      %p320 = scmp.eq.s32.totalorder %s28, 0
      %p321 = por %p319, %p320
      %p322 = scmp.ne.s32.totalorder %s308, %s309
      %p323 = scmp.eq.s32.totalorder %s29, 1
      %p324 = por %p322, %p323
      %p326 = scmp.ne.s32.totalorder %s309, %s325
      %p327 = scmp.eq.s32.totalorder %s29, 0
      %p328 = por %p326, %p327
      %s329 = ssub.s32 %s31, %s38
      %p330 = scmp.eq.s32.totalorder %s329, 0
      %s332 = sadd.s32 %s331, 1
      %s333 = scalar_select %p330, %s331, %s332
      %p336 = pneg %p330
      %p337 = scmp.eq.s32.totalorder %s23, 1
      %p338 = por %p336, %p337
      %p339 = scmp.ne.s32.totalorder %s331, %s334
      %p340 = scmp.eq.s32.totalorder %s23, 0
      %p341 = por %p339, %p340
      %p342 = scmp.ne.s32.totalorder %s331, %s334
      %p343 = scmp.eq.s32.totalorder %s28, 1
      %p344 = por %p342, %p343
      %p345 = scmp.ne.s32.totalorder %s334, %s335
      %p346 = scmp.eq.s32.totalorder %s28, 0
      %p347 = por %p345, %p346
      %p348 = scmp.ne.s32.totalorder %s334, %s335
      %p349 = scmp.eq.s32.totalorder %s29, 1
      %p350 = por %p348, %p349
      %p352 = scmp.ne.s32.totalorder %s335, %s351
      %p353 = scmp.eq.s32.totalorder %s29, 0
      %p354 = por %p352, %p353
      %s355 = ssub.s32 %s31, %s38
      %p356 = scmp.eq.s32.totalorder %s355, 0
      %s358 = sadd.s32 %s357, 1
      %s359 = scalar_select %p356, %s357, %s358
      %p362 = pneg %p356
      %p363 = scmp.eq.s32.totalorder %s23, 1
      %p364 = por %p362, %p363
      %p365 = scmp.ne.s32.totalorder %s357, %s360
      %p366 = scmp.eq.s32.totalorder %s23, 0
      %p367 = por %p365, %p366
      %p368 = scmp.ne.s32.totalorder %s357, %s360
      %p369 = scmp.eq.s32.totalorder %s28, 1
      %p370 = por %p368, %p369
      %p371 = scmp.ne.s32.totalorder %s360, %s361
      %p372 = scmp.eq.s32.totalorder %s28, 0
      %p373 = por %p371, %p372
      %p374 = scmp.ne.s32.totalorder %s360, %s361
      %p375 = scmp.eq.s32.totalorder %s29, 1
      %p376 = por %p374, %p375
      %p378 = scmp.ne.s32.totalorder %s361, %s377
      %p379 = scmp.eq.s32.totalorder %s29, 0
      %p380 = por %p378, %p379
      %s381 = ssub.s32 %s31, %s38
      %p382 = scmp.eq.s32.totalorder %s381, 0
      %s384 = sadd.s32 %s383, 1
      %s385 = scalar_select %p382, %s383, %s384
      %p388 = pneg %p382
      %p389 = scmp.eq.s32.totalorder %s23, 1
      %p390 = por %p388, %p389
      %p391 = scmp.ne.s32.totalorder %s383, %s386
      %p392 = scmp.eq.s32.totalorder %s23, 0
      %p393 = por %p391, %p392
      %p394 = scmp.ne.s32.totalorder %s383, %s386
      %p395 = scmp.eq.s32.totalorder %s28, 1
      %p396 = por %p394, %p395
      %p397 = scmp.ne.s32.totalorder %s386, %s387
      %p398 = scmp.eq.s32.totalorder %s28, 0
      %p399 = por %p397, %p398
      %p400 = scmp.ne.s32.totalorder %s386, %s387
      %p401 = scmp.eq.s32.totalorder %s29, 1
      %p402 = por %p400, %p401
      %p404 = scmp.ne.s32.totalorder %s387, %s403
      %p405 = scmp.eq.s32.totalorder %s29, 0
      %p406 = por %p404, %p405
      %s407 = ssub.s32 %s30, %s42
      %p408 = scmp.eq.s32.totalorder %s407, 0
      %s410 = sadd.s32 %s409, 1
      %s411 = scalar_select %p408, %s409, %s410
      %p414 = pneg %p408
      %p415 = scmp.eq.s32.totalorder %s23, 1
      %p416 = por %p414, %p415
      %p417 = scmp.ne.s32.totalorder %s409, %s412
      %p418 = scmp.eq.s32.totalorder %s23, 0
      %p419 = por %p417, %p418
      %p420 = scmp.ne.s32.totalorder %s409, %s412
      %p421 = scmp.eq.s32.totalorder %s28, 1
      %p422 = por %p420, %p421
      %p423 = scmp.ne.s32.totalorder %s412, %s413
      %p424 = scmp.eq.s32.totalorder %s28, 0
      %p425 = por %p423, %p424
      %p426 = scmp.ne.s32.totalorder %s412, %s413
      %p427 = scmp.eq.s32.totalorder %s29, 1
      %p428 = por %p426, %p427
      %p430 = scmp.ne.s32.totalorder %s413, %s429
      %p431 = scmp.eq.s32.totalorder %s29, 0
      %p432 = por %p430, %p431
      %p433 = scmp.le.s32.totalorder 1, %s23
      %p434 = scmp.lt.s32.totalorder %s23, 3
      %p435 = pnand %p433, %p434
      %p436 = pneg %p435
      // Predicated region
      $region9: #{tpu_custom_call.1} parent=5 // pred_check
        _
      $region10: #{tpu_custom_call.1} parent=5 // pred_check_branch
        %438 = sbr.rel (%p435) target = $region12
      $region11: #{tpu_custom_call.1} parent=5 // pred_region
        %s439 = ssub.s32 %s23, 1
        // Predicated region
        $region13: #{tpu_custom_call.1} parent=11 // pred_check
          %p440 = pneg %p61
        $region14: #{tpu_custom_call.1} parent=11 // pred_check_branch
          %442 = sbr.rel (%p440) target = $region16
        $region15: #{tpu_custom_call.1} parent=11 // pred_region
          %s443 = smul.u32 2, %s32
          %445 = vsyncadd [#allocation4], 0
          %s446 = smul.addr %s443, 8
          %s447 = scalar_lea.hbm %s0, %s446
          %s448 = sshll.u32 %s447, 4
          %s449 = int_to_ptr.hbm [resolvable:$true] %s448
          %s450 = sshll.u32 [#allocation3], 4
          %s451 = int_to_ptr.vmem [resolvable:$true] %s450
          %456 = dma.hbm_to_vmem [thread:$0]  %s449, 256, %s451, [#allocation4], 128, 128, 8
        $region16: #{tpu_custom_call.1} parent=11 // pred_fallthru
          _
        // Predicated region
        $region17: #{tpu_custom_call.1} parent=11 // pred_check
          %p457 = pneg %p87
        $region18: #{tpu_custom_call.1} parent=11 // pred_check_branch
          %459 = sbr.rel (%p457) target = $region20
        $region19: #{tpu_custom_call.1} parent=11 // pred_region
          %s460 = smul.u32 2, %s32
          %462 = vsyncadd [#allocation7], 0
          %s463 = scalar_lea.hbm %s1, %s460
          %s464 = sshll.u32 %s463, 4
          %s465 = int_to_ptr.hbm [resolvable:$true] %s464
          %s466 = sshll.u32 [#allocation6], 4
          %s467 = int_to_ptr.vmem [resolvable:$true] %s466
          %472 = dma.hbm_to_vmem [thread:$0]  %s465, 32, %s467, [#allocation7], 16, 16, 1
        $region20: #{tpu_custom_call.1} parent=11 // pred_fallthru
          _
      $region12: #{tpu_custom_call.1} parent=5 // pred_fallthru
        _
      %p473 = scmp.lt.s32.totalorder %s23, 2
      // Predicated region
      $region21: #{tpu_custom_call.1} parent=5 // pred_check
        %p474 = pneg %p473
      $region22: #{tpu_custom_call.1} parent=5 // pred_check_branch
        %476 = sbr.rel (%p474) target = $region24
      $region23: #{tpu_custom_call.1} parent=5 // pred_region
        // Predicated region
        $region25: #{tpu_custom_call.1} parent=23 // pred_check
          %p477 = pneg %p107
        $region26: #{tpu_custom_call.1} parent=23 // pred_check_branch
          %479 = sbr.rel (%p477) target = $region28
        $region27: #{tpu_custom_call.1} parent=23 // pred_region
          %s480 = sand.u32 %s23, 1
          %s481 = scalar_lea.sflag [#allocation4], %s480
          %s482 = sand.u32 %s97, 1
          %s483 = scalar_lea.vmem [#allocation8], %s482
          %485 = vsyncadd %s481, 0
          %s486 = scalar_lea.hbm %s2, %s31
          %s488 = sshll.u32 %s486, 4
          %s489 = int_to_ptr.hbm [resolvable:$true] %s488
          %s490 = sshll.u32 %s483, 4
          %s491 = int_to_ptr.vmem [resolvable:$true] %s490
          %493 = dma.hbm_to_vmem [thread:$0]  %s489, 16, %s491, %s481
        $region28: #{tpu_custom_call.1} parent=23 // pred_fallthru
          _
        // Predicated region
        $region29: #{tpu_custom_call.1} parent=23 // pred_check
          %p494 = pneg %p133
        $region30: #{tpu_custom_call.1} parent=23 // pred_check_branch
          %496 = sbr.rel (%p494) target = $region32
        $region31: #{tpu_custom_call.1} parent=23 // pred_region
          %s497 = sand.u32 %s23, 1
          %s498 = scalar_lea.sflag [#allocation4], %s497
          %s499 = sand.u32 %s123, 1
          %s500 = scalar_lea.vmem [#allocation9], %s499
          %502 = vsyncadd %s498, 0
          %s503 = scalar_lea.hbm %s3, %s31
          %s505 = sshll.u32 %s503, 4
          %s506 = int_to_ptr.hbm [resolvable:$true] %s505
          %s507 = sshll.u32 %s500, 4
          %s508 = int_to_ptr.vmem [resolvable:$true] %s507
          %510 = dma.hbm_to_vmem [thread:$0]  %s506, 16, %s508, %s498
        $region32: #{tpu_custom_call.1} parent=23 // pred_fallthru
          _
        // Predicated region
        $region33: #{tpu_custom_call.1} parent=23 // pred_check
          %p511 = pneg %p159
        $region34: #{tpu_custom_call.1} parent=23 // pred_check_branch
          %513 = sbr.rel (%p511) target = $region36
        $region35: #{tpu_custom_call.1} parent=23 // pred_region
          %p514 = scmp.lt.s32.totalorder %s31, 1
          %s515 = scalar_select %p514, %s31, 1
          %s516 = smul.addr %s515, 4
          %s517 = smul.addr %s516, 4
          %s518 = scalar_lea.vmem %s4, %s517
        $region36: #{tpu_custom_call.1} parent=23 // pred_fallthru
          _
        // Predicated region
        $region37: #{tpu_custom_call.1} parent=23 // pred_check
          %p519 = pneg %p185
        $region38: #{tpu_custom_call.1} parent=23 // pred_check_branch
          %521 = sbr.rel (%p519) target = $region40
        $region39: #{tpu_custom_call.1} parent=23 // pred_region
          %p522 = scmp.lt.s32.totalorder %s31, 1
          %s523 = scalar_select %p522, %s31, 1
          %s524 = scalar_lea.vmem %s5, %s523
        $region40: #{tpu_custom_call.1} parent=23 // pred_fallthru
          _
        // Predicated region
        $region41: #{tpu_custom_call.1} parent=23 // pred_check
          %p525 = pneg %p211
        $region42: #{tpu_custom_call.1} parent=23 // pred_check_branch
          %527 = sbr.rel (%p525) target = $region44
        $region43: #{tpu_custom_call.1} parent=23 // pred_region
          %p528 = scmp.lt.s32.totalorder %s31, 1
          %s529 = scalar_select %p528, %s31, 1
          %s530 = smul.addr %s529, 4
          %s531 = smul.addr %s530, 4
          %s532 = scalar_lea.vmem %s6, %s531
        $region44: #{tpu_custom_call.1} parent=23 // pred_fallthru
          _
        // Predicated region
        $region45: #{tpu_custom_call.1} parent=23 // pred_check
          %p533 = pneg %p237
        $region46: #{tpu_custom_call.1} parent=23 // pred_check_branch
          %535 = sbr.rel (%p533) target = $region48
        $region47: #{tpu_custom_call.1} parent=23 // pred_region
          %p536 = scmp.lt.s32.totalorder %s31, 1
          %s537 = scalar_select %p536, %s31, 1
          %s538 = scalar_lea.vmem %s7, %s537
        $region48: #{tpu_custom_call.1} parent=23 // pred_fallthru
          _
        // Predicated region
        $region49: #{tpu_custom_call.1} parent=23 // pred_check
          %p539 = pneg %p263
        $region50: #{tpu_custom_call.1} parent=23 // pred_check_branch
          %541 = sbr.rel (%p539) target = $region52
        $region51: #{tpu_custom_call.1} parent=23 // pred_region
          %p542 = scmp.lt.s32.totalorder %s31, 1
          %s543 = scalar_select %p542, %s31, 1
          %s544 = scalar_lea.vmem %s8, %s543
        $region52: #{tpu_custom_call.1} parent=23 // pred_fallthru
          _
        // Predicated region
        $region53: #{tpu_custom_call.1} parent=23 // pred_check
          %p545 = pneg %p289
        $region54: #{tpu_custom_call.1} parent=23 // pred_check_branch
          %547 = sbr.rel (%p545) target = $region56
        $region55: #{tpu_custom_call.1} parent=23 // pred_region
          %s548 = sand.u32 %s23, 1
          %s549 = scalar_lea.sflag [#allocation4], %s548
          %s550 = sand.u32 %s279, 1
          %s551 = scalar_lea.vmem [#allocation10], %s550
          %553 = vsyncadd %s549, 0
          %s554 = scalar_lea.hbm %s9, %s31
          %s556 = sshll.u32 %s554, 4
          %s557 = int_to_ptr.hbm [resolvable:$true] %s556
          %s558 = sshll.u32 %s551, 4
          %s559 = int_to_ptr.vmem [resolvable:$true] %s558
          %561 = dma.hbm_to_vmem [thread:$0]  %s557, 16, %s559, %s549
        $region56: #{tpu_custom_call.1} parent=23 // pred_fallthru
          _
        // Predicated region
        $region57: #{tpu_custom_call.1} parent=23 // pred_check
          %p562 = pneg %p315
        $region58: #{tpu_custom_call.1} parent=23 // pred_check_branch
          %564 = sbr.rel (%p562) target = $region60
        $region59: #{tpu_custom_call.1} parent=23 // pred_region
          %p565 = scmp.lt.s32.totalorder %s31, 1
          %s566 = scalar_select %p565, %s31, 1
          %s567 = smul.addr %s566, 4
          %s568 = smul.addr %s567, 4
          %s569 = scalar_lea.vmem %s10, %s568
        $region60: #{tpu_custom_call.1} parent=23 // pred_fallthru
          _
        // Predicated region
        $region61: #{tpu_custom_call.1} parent=23 // pred_check
          %p570 = pneg %p341
        $region62: #{tpu_custom_call.1} parent=23 // pred_check_branch
          %572 = sbr.rel (%p570) target = $region64
        $region63: #{tpu_custom_call.1} parent=23 // pred_region
          %p573 = scmp.lt.s32.totalorder %s31, 1
          %s574 = scalar_select %p573, %s31, 1
          %s575 = scalar_lea.vmem %s11, %s574
        $region64: #{tpu_custom_call.1} parent=23 // pred_fallthru
          _
        // Predicated region
        $region65: #{tpu_custom_call.1} parent=23 // pred_check
          %p576 = pneg %p367
        $region66: #{tpu_custom_call.1} parent=23 // pred_check_branch
          %578 = sbr.rel (%p576) target = $region68
        $region67: #{tpu_custom_call.1} parent=23 // pred_region
          %p579 = scmp.lt.s32.totalorder %s31, 1
          %s580 = scalar_select %p579, %s31, 1
          %s581 = smul.addr %s580, 8
          %s582 = smul.addr %s581, 4
          %s583 = scalar_lea.vmem %s12, %s582
        $region68: #{tpu_custom_call.1} parent=23 // pred_fallthru
          _
        // Predicated region
        $region69: #{tpu_custom_call.1} parent=23 // pred_check
          %p584 = pneg %p393
        $region70: #{tpu_custom_call.1} parent=23 // pred_check_branch
          %586 = sbr.rel (%p584) target = $region72
        $region71: #{tpu_custom_call.1} parent=23 // pred_region
          %p587 = scmp.lt.s32.totalorder %s31, 1
          %s588 = scalar_select %p587, %s31, 1
          %s589 = scalar_lea.vmem %s13, %s588
        $region72: #{tpu_custom_call.1} parent=23 // pred_fallthru
          _
      $region24: #{tpu_custom_call.1} parent=5 // pred_fallthru
        _
      %p590 = scmp.le.s32.totalorder 1, %s23
      %p591 = scmp.lt.s32.totalorder %s23, 3
      %p592 = pnand %p590, %p591
      %p593 = pneg %p592
      // Predicated region
      $region73: #{tpu_custom_call.1} parent=5 // pred_check
        _
      $region74: #{tpu_custom_call.1} parent=5 // pred_check_branch
        %595 = sbr.rel (%p592) target = $region76
      $region75: #{tpu_custom_call.1} parent=5 // pred_region
        %s596 = ssub.s32 %s23, 1
        // Predicated region
        $region77: #{tpu_custom_call.1} parent=75 // pred_check
          %p597 = pneg %p61
        $region78: #{tpu_custom_call.1} parent=75 // pred_check_branch
          %599 = sbr.rel (%p597) target = $region80
        $region79: #{tpu_custom_call.1} parent=75 // pred_region
          %601 = dma.done [#allocation4], 256
        $region80: #{tpu_custom_call.1} parent=75 // pred_fallthru
          _
        // Predicated region
        $region81: #{tpu_custom_call.1} parent=75 // pred_check
          %p602 = pneg %p87
        $region82: #{tpu_custom_call.1} parent=75 // pred_check_branch
          %604 = sbr.rel (%p602) target = $region84
        $region83: #{tpu_custom_call.1} parent=75 // pred_region
          %606 = dma.done [#allocation7], 32
        $region84: #{tpu_custom_call.1} parent=75 // pred_fallthru
          _
        %s607 = sand.u32 %s28, 1
        %s608 = scalar_lea.sflag [#allocation4], %s607
        %s609 = sand.u32 %s100, 1
        %s610 = scalar_lea.vmem [#allocation8], %s609
        // Predicated region
        $region85: #{tpu_custom_call.1} parent=75 // pred_check
          %p611 = pneg %p113
        $region86: #{tpu_custom_call.1} parent=75 // pred_check_branch
          %613 = sbr.rel (%p611) target = $region88
        $region87: #{tpu_custom_call.1} parent=75 // pred_region
          %615 = dma.done %s608, 16
        $region88: #{tpu_custom_call.1} parent=75 // pred_fallthru
          _
        %s616 = sand.u32 %s28, 1
        %s617 = scalar_lea.sflag [#allocation4], %s616
        %s618 = sand.u32 %s126, 1
        %s619 = scalar_lea.vmem [#allocation9], %s618
        // Predicated region
        $region89: #{tpu_custom_call.1} parent=75 // pred_check
          %p620 = pneg %p139
        $region90: #{tpu_custom_call.1} parent=75 // pred_check_branch
          %622 = sbr.rel (%p620) target = $region92
        $region91: #{tpu_custom_call.1} parent=75 // pred_region
          %624 = dma.done %s617, 16
        $region92: #{tpu_custom_call.1} parent=75 // pred_fallthru
          _
        %s625 = sand.u32 %s28, 1
        %s626 = scalar_lea.sflag [#allocation4], %s625
        %s627 = sand.u32 %s282, 1
        %s628 = scalar_lea.vmem [#allocation10], %s627
        // Predicated region
        $region93: #{tpu_custom_call.1} parent=75 // pred_check
          %p629 = pneg %p295
        $region94: #{tpu_custom_call.1} parent=75 // pred_check_branch
          %631 = sbr.rel (%p629) target = $region96
        $region95: #{tpu_custom_call.1} parent=75 // pred_region
          %633 = dma.done %s626, 16
        $region96: #{tpu_custom_call.1} parent=75 // pred_fallthru
          _
        %p634 = pneg %p61
        %p635 = pneg %p58
        %p636 = pneg %p87
        %p637 = pneg %p84
        %s638 = sand.u32 %s28, 1
        %s639 = scalar_lea.sflag [#allocation4], %s638
        %s640 = sand.u32 %s100, 1
        %s641 = scalar_lea.vmem [#allocation8], %s640
        %p642 = pneg %p113
        %p643 = pneg %p110
        %s644 = sand.u32 %s28, 1
        %s645 = scalar_lea.sflag [#allocation4], %s644
        %s646 = sand.u32 %s126, 1
        %s647 = scalar_lea.vmem [#allocation9], %s646
        %p648 = pneg %p139
        %p649 = pneg %p136
        %p650 = scmp.lt.s32.totalorder %s33, 1
        %s651 = scalar_select %p650, %s33, 1
        %s652 = smul.addr %s651, 4
        %s653 = smul.addr %s652, 4
        %s654 = scalar_lea.vmem %s4, %s653
        %p655 = pneg %p165
        %p656 = pneg %p162
        %p657 = scmp.lt.s32.totalorder %s33, 1
        %s658 = scalar_select %p657, %s33, 1
        %s659 = scalar_lea.vmem %s5, %s658
        %p660 = pneg %p191
        %p661 = pneg %p188
        %p662 = scmp.lt.s32.totalorder %s33, 1
        %s663 = scalar_select %p662, %s33, 1
        %s664 = smul.addr %s663, 4
        %s665 = smul.addr %s664, 4
        %s666 = scalar_lea.vmem %s6, %s665
        %p667 = pneg %p217
        %p668 = pneg %p214
        %p669 = scmp.lt.s32.totalorder %s33, 1
        %s670 = scalar_select %p669, %s33, 1
        %s671 = scalar_lea.vmem %s7, %s670
        %p672 = pneg %p243
        %p673 = pneg %p240
        %p674 = scmp.lt.s32.totalorder %s33, 1
        %s675 = scalar_select %p674, %s33, 1
        %s676 = scalar_lea.vmem %s8, %s675
        %p677 = pneg %p269
        %p678 = pneg %p266
        %s679 = sand.u32 %s28, 1
        %s680 = scalar_lea.sflag [#allocation4], %s679
        %s681 = sand.u32 %s282, 1
        %s682 = scalar_lea.vmem [#allocation10], %s681
        %p683 = pneg %p295
        %p684 = pneg %p292
        %p685 = scmp.lt.s32.totalorder %s33, 1
        %s686 = scalar_select %p685, %s33, 1
        %s687 = smul.addr %s686, 4
        %s688 = smul.addr %s687, 4
        %s689 = scalar_lea.vmem %s10, %s688
        %p690 = pneg %p321
        %p691 = pneg %p318
        %p692 = scmp.lt.s32.totalorder %s33, 1
        %s693 = scalar_select %p692, %s33, 1
        %s694 = scalar_lea.vmem %s11, %s693
        %p695 = pneg %p347
        %p696 = pneg %p344
        %p697 = scmp.lt.s32.totalorder %s33, 1
        %s698 = scalar_select %p697, %s33, 1
        %s699 = smul.addr %s698, 8
        %s700 = smul.addr %s699, 4
        %s701 = scalar_lea.vmem %s12, %s700
        %p702 = pneg %p373
        %p703 = pneg %p370
        %p704 = scmp.lt.s32.totalorder %s33, 1
        %s705 = scalar_select %p704, %s33, 1
        %s706 = scalar_lea.vmem %s13, %s705
        %p707 = pneg %p399
        %p708 = pneg %p396
        %p709 = pneg %p425
        %p710 = pneg %p422
        %s711 = smul.u32 2, %s32
        %s712 = smul.u32 2, %s32
        %p713 = scmp.lt.s32.totalorder %s33, 1
        %s714 = scalar_select %p713, %s33, 1
        %s715 = smul.addr %s714, 4
        %s716 = smul.addr %s715, 4
        %s717 = scalar_lea.vmem %s4, %s716
        %p718 = scmp.lt.s32.totalorder %s33, 1
        %s719 = scalar_select %p718, %s33, 1
        %s720 = scalar_lea.vmem %s5, %s719
        %p721 = scmp.lt.s32.totalorder %s33, 1
        %s722 = scalar_select %p721, %s33, 1
        %s723 = smul.addr %s722, 4
        %s724 = smul.addr %s723, 4
        %s725 = scalar_lea.vmem %s6, %s724
        %p726 = scmp.lt.s32.totalorder %s33, 1
        %s727 = scalar_select %p726, %s33, 1
        %s728 = scalar_lea.vmem %s7, %s727
        %p729 = scmp.lt.s32.totalorder %s33, 1
        %s730 = scalar_select %p729, %s33, 1
        %s731 = scalar_lea.vmem %s8, %s730
        %p732 = scmp.lt.s32.totalorder %s33, 1
        %s733 = scalar_select %p732, %s33, 1
        %s734 = smul.addr %s733, 4
        %s735 = smul.addr %s734, 4
        %s736 = scalar_lea.vmem %s10, %s735
        %p737 = scmp.lt.s32.totalorder %s33, 1
        %s738 = scalar_select %p737, %s33, 1
        %s739 = scalar_lea.vmem %s11, %s738
        %p740 = scmp.lt.s32.totalorder %s33, 1
        %s741 = scalar_select %p740, %s33, 1
        %s742 = smul.addr %s741, 8
        %s743 = smul.addr %s742, 4
        %s744 = scalar_lea.vmem %s12, %s743
        %p745 = scmp.lt.s32.totalorder %s33, 1
        %s746 = scalar_select %p745, %s33, 1
        %s747 = scalar_lea.vmem %s13, %s746
        %s748 = smul.u32 2, %s32
        %p750 = scmp.eq.s32.totalorder %s33, 0
        // Predicated region
        $region97: #{tpu_custom_call.1} parent=75 // pred_check
          %p751 = pneg %p750
        $region98: #{tpu_custom_call.1} parent=75 // pred_check_branch
          %753 = sbr.rel (%p751) target = $region100
        $region99: #{tpu_custom_call.1} parent=75 // pred_region
          %v754 = vld [vmem:[#allocation3] sm:$0xff]
          %v755 = vld [vmem:[#allocation3 + $0x8] sm:$0xff]
          %vm756 = vcmask 261120
          %757 = vst.msk [vmem:[#allocation2] sm:$0xff] %vm756, %v754
          %758 = vst.msk [vmem:[#allocation2 + $0x8] sm:$0xff] %vm756, %v755
        $region100: #{tpu_custom_call.1} parent=75 // pred_fallthru
          _
        %v759 = vld [vmem:[#allocation2] sm:$0xff]
        %v760 = vld [vmem:[#allocation2 + $0x8] sm:$0xff]
        %v761 = vld [vmem:[#allocation6] sm:$0x1]
        %v762 = vld [vmem:[#allocation6 + $0x1] sm:$0x1]
        %v763 = vld [vmem:[%s610] sm:$0x1]
        %v764 = vld [vmem:[%s619] sm:$0x1]
        %vm765 = vcmask 261120
        %v766 = vsel %vm765, %v759, 0.0
        %767 = vadd.xlane.f32.xlu0 %v766
        %v768 = vpop.xlane.xlu0 %767
        %v769 = vsel %vm765, %v760, 0.0
        %770 = vadd.xlane.f32.xlu0 %v769
        %v771 = vpop.xlane.xlu0 %770
        %v772 = vrcp.pop 32.0
        %v773 = vmul.f32 32.0, %v772
        %v774 = vsub.f32 1.0, %v773
        %v775 = vmul.f32 %v772, %v774
        %v776 = vadd.f32 %v772, %v775
        %vm777 = vweird.f32 %v772
        %v778 = vsel %vm777, %v772, %v776
        %v779 = vmul.f32 %v768, %v778
        %v780 = vmul.f32 %v771, %v778
        %v781 = vsub.f32 %v759, %v779
        %v782 = vsub.f32 %v760, %v780
        %v783 = vmul.f32 %v781, %v781
        %v784 = vmul.f32 %v782, %v782
        %v785 = vsel %vm765, %v783, 0.0
        %786 = vadd.xlane.f32.xlu0 %v785
        %v787 = vpop.xlane.xlu0 %786
        %v788 = vsel %vm765, %v784, 0.0
        %789 = vadd.xlane.f32.xlu0 %v788
        %v790 = vpop.xlane.xlu0 %789
        %v791 = vmul.f32 %v787, %v778
        %v792 = vmul.f32 %v790, %v778
        %v793 = vadd.f32 %v791, 1e-05
        %v794 = vadd.f32 %v792, 1e-05
        %v795 = vrsqrt.pop %v793
        %v796 = vmul.f32 %v795, %v793
        %v797 = vmul.f32 %v796, %v795
        %v798 = vmul.f32 0.5, %v797
        %v799 = vsub.f32 1.5, %v798
        %v800 = vmul.f32 %v795, %v799
        %vm801 = vweird.f32 %v793
        %vm802 = vweird.f32 %v795
        %vm803 = vmor %vm801, %vm802
        %v804 = vsel %vm803, %v795, %v800
        %v805 = vrsqrt.pop %v794
        %v806 = vmul.f32 %v805, %v794
        %v807 = vmul.f32 %v806, %v805
        %v808 = vmul.f32 0.5, %v807
        %v809 = vsub.f32 1.5, %v808
        %v810 = vmul.f32 %v805, %v809
        %vm811 = vweird.f32 %v794
        %vm812 = vweird.f32 %v805
        %vm813 = vmor %vm811, %vm812
        %v814 = vsel %vm813, %v805, %v810
        %v815 = vmul.f32 %v781, %v804
        %v816 = vmul.f32 %v782, %v814
        %v818 = vperm.slane %v763, 0
        %v820 = vmul.f32 %v815, %v818
        %v821 = vmul.f32 %v816, %v818
        %v823 = vperm.slane %v764, 0
        %v825 = vadd.f32 %v820, %v823
        %v826 = vadd.f32 %v821, %v823
        %v827 = vpack.c.bf16 %v825, %v825
        %v828 = vpack.c.bf16 %v826, %v826
        %v829 = vld [vmem:[%s717] sm:$0xf]
        %v830 = vld [vmem:[%s717 + $0x4] sm:$0xf]
        %v831 = vld [vmem:[%s717 + $0x8] sm:$0xf]
        %v832 = vld [vmem:[%s717 + $0xc] sm:$0xf]
        %v833 = vld [vmem:[%s720] sm:$0x1]
        %v835 = vperm.slane %v833, 0
        %v839 = vunpack.c.l.b16 %v827
        %v840 = vunpack.c.l.b16 %v828
        %v841 = vpack.c.b16 %v840, %v839
        %v846 = vunpack.c.l.b16 %v829
        %v847 = vunpack.c.l.b16 %v830
        %v848 = vunpack.c.l.b16 %v831
        %v849 = vunpack.c.l.b16 %v832
        %v850 = vpack.c.b16 %v847, %v846
        %v851 = vpack.c.b16 %v849, %v848
        %v855 = vsel %vm765, %v841, 0
        %857 = vmatpush.bf16.msra.mxu0 0
        %858 = vmatpush.bf16.msra.mxu0 0
        %859 = vmatpush.bf16.msra.mxu0 0
        %860 = vmatpush.bf16.msra.mxu0 0
        %861 = vmatpush.bf16.msra.mxu0 0
        %862 = vmatpush.bf16.msra.mxu0 0
        %863 = vmatpush.bf16.msra.mxu0 %v851
        %864 = vmatpush.bf16.msra.mxu0 %v850
        %865 = vmatmul.bf16.gmra.mxu0 %v855
        %v866 = vpop.f32.mrf.mxu0
        %v867 = vadd.f32 %v835, %v866
        %v868 = vpop.f32.mrf.mxu0
        %v869 = vadd.f32 %v835, %v868
        %870 = vdwg.mxu0
        %v871 = vpack.c.bf16 %v867, %v867
        %v872 = vpack.c.bf16 %v869, %v869
        %v875 = vperm.slane %v761, 0
        %v876 = vperm.slane %v762, 0
        %v880 = vunpack.c.l.b16 %v871
        %v881 = vpack.c.b16 %v880, %v880
        %882 = vrot.lane.b32.xlu0 %v881, 96
        %v883 = vpop.permute.xlu0 %882
        %vm884 = vcmask 64512
        %v886 = vsel %vm884, %v871, 0
        %v889 = vsel %vm884, %v883, 0
        %891 = vmatpush.bf16.xpose.msra.mxu0 0
        %892 = vmatpush.bf16.xpose.msra.mxu0 0
        %893 = vmatpush.bf16.xpose.msra.mxu0 0
        %894 = vmatpush.bf16.xpose.msra.mxu0 0
        %895 = vmatpush.bf16.xpose.msra.mxu0 0
        %896 = vmatpush.bf16.xpose.msra.mxu0 0
        %897 = vmatpush.bf16.xpose.msra.mxu0 0
        %898 = vmatpush.bf16.xpose.msra.mxu0 %v889
        %899 = vmatmul.bf16.gmra.mxu0 %v886
        %v900 = vpop.f32.mrf.mxu0
        %v901 = vadd.f32 %v875, %v900
        %v902 = vpop.f32.mrf.mxu0
        %903 = vdwg.mxu0
        %v905 = vunpack.c.l.b16 %v872
        %v906 = vpack.c.b16 %v905, %v905
        %907 = vrot.lane.b32.xlu0 %v906, 96
        %v908 = vpop.permute.xlu0 %907
        %v910 = vsel %vm884, %v872, 0
        %v913 = vsel %vm884, %v908, 0
        %915 = vmatpush.bf16.xpose.msra.mxu0 0
        %916 = vmatpush.bf16.xpose.msra.mxu0 0
        %917 = vmatpush.bf16.xpose.msra.mxu0 0
        %918 = vmatpush.bf16.xpose.msra.mxu0 0
        %919 = vmatpush.bf16.xpose.msra.mxu0 0
        %920 = vmatpush.bf16.xpose.msra.mxu0 0
        %921 = vmatpush.bf16.xpose.msra.mxu0 0
        %922 = vmatpush.bf16.xpose.msra.mxu0 %v913
        %923 = vmatmul.bf16.gmra.mxu0 %v910
        %v924 = vpop.f32.mrf.mxu0
        %v925 = vadd.f32 %v876, %v924
        %v926 = vpop.f32.mrf.mxu0
        %927 = vdwg.mxu0
        %v928 = vsel %vm884, %v901, -inf
        %929 = vmax.xlane.f32.xlu0 %v928
        %v930 = vpop.xlane.xlu0 %929
        %v931 = vsel %vm884, %v925, -inf
        %932 = vmax.xlane.f32.xlu0 %v931
        %v933 = vpop.xlane.xlu0 %932
        %v934 = vsub.f32 %v901, %v930
        %v935 = vsub.f32 %v925, %v933
        %v936 = vmul.f32 %v934, 1.442695
        %v937 = vpow.pop %v936
        %v938 = vmul.f32 %v935, 1.442695
        %v939 = vpow.pop %v938
        %v940 = vsel %vm884, %v937, 0.0
        %941 = vadd.xlane.f32.xlu0 %v940
        %v942 = vpop.xlane.xlu0 %941
        %v943 = vsel %vm884, %v939, 0.0
        %944 = vadd.xlane.f32.xlu0 %v943
        %v945 = vpop.xlane.xlu0 %944
        %v946 = vrcp.pop %v942
        %v947 = vrcp.pop %v945
        %v948 = vmul.f32 %v937, %v946
        %v949 = vmul.f32 %v939, %v947
        %v950 = vpack.c.bf16 %v948, %v948
        %v951 = vpack.c.bf16 %v949, %v949
        %952 = vrot.lane.b32.xlu0 %v881, 64
        %v953 = vpop.permute.xlu0 %952
        %v955 = vsel %vm884, %v950, 0
        %vm957 = vcmask 1043456
        %v959 = vsel %vm957, %v953, 0
        %961 = vmatpush.bf16.msra.mxu0 0
        %962 = vmatpush.bf16.msra.mxu0 0
        %963 = vmatpush.bf16.msra.mxu0 0
        %964 = vmatpush.bf16.msra.mxu0 0
        %965 = vmatpush.bf16.msra.mxu0 0
        %966 = vmatpush.bf16.msra.mxu0 0
        %967 = vmatpush.bf16.msra.mxu0 0
        %968 = vmatpush.bf16.msra.mxu0 %v959
        %969 = vmatmul.bf16.gmra.mxu0 %v955
        %v970 = vpop.f32.mrf.mxu0
        %v971 = vadd.f32 0.0, %v970
        %v972 = vpop.f32.mrf.mxu0
        %973 = vdwg.mxu0
        %974 = vrot.lane.b32.xlu0 %v906, 64
        %v975 = vpop.permute.xlu0 %974
        %v977 = vsel %vm884, %v951, 0
        %v980 = vsel %vm957, %v975, 0
        %982 = vmatpush.bf16.msra.mxu0 0
        %983 = vmatpush.bf16.msra.mxu0 0
        %984 = vmatpush.bf16.msra.mxu0 0
        %985 = vmatpush.bf16.msra.mxu0 0
        %986 = vmatpush.bf16.msra.mxu0 0
        %987 = vmatpush.bf16.msra.mxu0 0
        %988 = vmatpush.bf16.msra.mxu0 0
        %989 = vmatpush.bf16.msra.mxu0 %v980
        %990 = vmatmul.bf16.gmra.mxu0 %v977
        %v991 = vpop.f32.mrf.mxu0
        %v992 = vadd.f32 0.0, %v991
        %v993 = vpop.f32.mrf.mxu0
        %994 = vdwg.mxu0
        %v995 = vpack.c.bf16 %v971, %v971
        %v996 = vpack.c.bf16 %v992, %v992
        %v997 = vld [vmem:[%s725] sm:$0xf]
        %998 = vrot.lane.b32.xlu0 %v881, 120
        %v999 = vpop.permute.xlu0 %998
        %1000 = vrot.lane.b32.xlu0 %v881, 88
        %v1001 = vpop.permute.xlu0 %1000
        %v1003 = vsel %vm884, %v999, 0
        %v1006 = vsel %vm884, %v1001, 0
        %1008 = vmatpush.bf16.xpose.msra.mxu0 0
        %1009 = vmatpush.bf16.xpose.msra.mxu0 0
        %1010 = vmatpush.bf16.xpose.msra.mxu0 0
        %1011 = vmatpush.bf16.xpose.msra.mxu0 0
        %1012 = vmatpush.bf16.xpose.msra.mxu0 0
        %1013 = vmatpush.bf16.xpose.msra.mxu0 0
        %1014 = vmatpush.bf16.xpose.msra.mxu0 0
        %1015 = vmatpush.bf16.xpose.msra.mxu0 %v1006
        %1016 = vmatmul.bf16.gmra.mxu0 %v1003
        %v1017 = vpop.f32.mrf.mxu0
        %v1018 = vadd.f32 %v875, %v1017
        %v1019 = vpop.f32.mrf.mxu0
        %1020 = vdwg.mxu0
        %1021 = vrot.lane.b32.xlu0 %v906, 120
        %v1022 = vpop.permute.xlu0 %1021
        %1023 = vrot.lane.b32.xlu0 %v906, 88
        %v1024 = vpop.permute.xlu0 %1023
        %v1026 = vsel %vm884, %v1022, 0
        %v1029 = vsel %vm884, %v1024, 0
        %1031 = vmatpush.bf16.xpose.msra.mxu0 0
        %1032 = vmatpush.bf16.xpose.msra.mxu0 0
        %1033 = vmatpush.bf16.xpose.msra.mxu0 0
        %1034 = vmatpush.bf16.xpose.msra.mxu0 0
        %1035 = vmatpush.bf16.xpose.msra.mxu0 0
        %1036 = vmatpush.bf16.xpose.msra.mxu0 0
        %1037 = vmatpush.bf16.xpose.msra.mxu0 0
        %1038 = vmatpush.bf16.xpose.msra.mxu0 %v1029
        %1039 = vmatmul.bf16.gmra.mxu0 %v1026
        %v1040 = vpop.f32.mrf.mxu0
        %v1041 = vadd.f32 %v876, %v1040
        %v1042 = vpop.f32.mrf.mxu0
        %1043 = vdwg.mxu0
        %v1044 = vsel %vm884, %v1018, -inf
        %1045 = vmax.xlane.f32.xlu0 %v1044
        %v1046 = vpop.xlane.xlu0 %1045
        %v1047 = vsel %vm884, %v1041, -inf
        %1048 = vmax.xlane.f32.xlu0 %v1047
        %v1049 = vpop.xlane.xlu0 %1048
        %v1050 = vsub.f32 %v1018, %v1046
        %v1051 = vsub.f32 %v1041, %v1049
        %v1052 = vmul.f32 %v1050, 1.442695
        %v1053 = vpow.pop %v1052
        %v1054 = vmul.f32 %v1051, 1.442695
        %v1055 = vpow.pop %v1054
        %v1056 = vsel %vm884, %v1053, 0.0
        %1057 = vadd.xlane.f32.xlu0 %v1056
        %v1058 = vpop.xlane.xlu0 %1057
        %v1059 = vsel %vm884, %v1055, 0.0
        %1060 = vadd.xlane.f32.xlu0 %v1059
        %v1061 = vpop.xlane.xlu0 %1060
        %v1062 = vrcp.pop %v1058
        %v1063 = vrcp.pop %v1061
        %v1064 = vmul.f32 %v1053, %v1062
        %v1065 = vmul.f32 %v1055, %v1063
        %v1066 = vpack.c.bf16 %v1064, %v1064
        %v1067 = vpack.c.bf16 %v1065, %v1065
        %1068 = vrot.lane.b32.xlu0 %v881, 56
        %v1069 = vpop.permute.xlu0 %1068
        %v1071 = vsel %vm884, %v1066, 0
        %v1074 = vsel %vm957, %v1069, 0
        %1076 = vmatpush.bf16.msra.mxu0 0
        %1077 = vmatpush.bf16.msra.mxu0 0
        %1078 = vmatpush.bf16.msra.mxu0 0
        %1079 = vmatpush.bf16.msra.mxu0 0
        %1080 = vmatpush.bf16.msra.mxu0 0
        %1081 = vmatpush.bf16.msra.mxu0 0
        %1082 = vmatpush.bf16.msra.mxu0 0
        %1083 = vmatpush.bf16.msra.mxu0 %v1074
        %1084 = vmatmul.bf16.gmra.mxu0 %v1071
        %v1085 = vpop.f32.mrf.mxu0
        %v1086 = vadd.f32 0.0, %v1085
        %v1087 = vpop.f32.mrf.mxu0
        %1088 = vdwg.mxu0
        %1089 = vrot.lane.b32.xlu0 %v906, 56
        %v1090 = vpop.permute.xlu0 %1089
        %v1092 = vsel %vm884, %v1067, 0
        %v1095 = vsel %vm957, %v1090, 0
        %1097 = vmatpush.bf16.msra.mxu0 0
        %1098 = vmatpush.bf16.msra.mxu0 0
        %1099 = vmatpush.bf16.msra.mxu0 0
        %1100 = vmatpush.bf16.msra.mxu0 0
        %1101 = vmatpush.bf16.msra.mxu0 0
        %1102 = vmatpush.bf16.msra.mxu0 0
        %1103 = vmatpush.bf16.msra.mxu0 0
        %1104 = vmatpush.bf16.msra.mxu0 %v1095
        %1105 = vmatmul.bf16.gmra.mxu0 %v1092
        %v1106 = vpop.f32.mrf.mxu0
        %v1107 = vadd.f32 0.0, %v1106
        %v1108 = vpop.f32.mrf.mxu0
        %1109 = vdwg.mxu0
        %v1110 = vpack.c.bf16 %v1086, %v1086
        %v1111 = vpack.c.bf16 %v1107, %v1107
        %v1112 = vld [vmem:[%s725 + $0x4] sm:$0xf]
        %v1115 = vunpack.c.l.b16 %v1110
        %v1116 = vunpack.c.l.b16 %v1111
        %v1117 = vpack.c.b16 %v1116, %v1115
        %v1119 = vsel %vm884, %v1117, 0
        %v1122 = vsel %vm957, %v1112, 0
        %1124 = vmatpush.bf16.msra.mxu0 0
        %1125 = vmatpush.bf16.msra.mxu0 0
        %1126 = vmatpush.bf16.msra.mxu0 0
        %1127 = vmatpush.bf16.msra.mxu0 0
        %1128 = vmatpush.bf16.msra.mxu0 0
        %1129 = vmatpush.bf16.msra.mxu0 0
        %1130 = vmatpush.bf16.msra.mxu0 0
        %1131 = vmatpush.bf16.msra.mxu0 %v1122
        %1132 = vmatmul.bf16.gmra.mxu0 %v1119
        %v1133 = vpop.f32.mrf.mxu0
        %v1134 = vadd.f32 0.0, %v1133
        %v1135 = vpop.f32.mrf.mxu0
        %v1136 = vadd.f32 0.0, %v1135
        %1137 = vdwg.mxu0
        %v1140 = vunpack.c.l.b16 %v995
        %v1141 = vunpack.c.l.b16 %v996
        %v1142 = vpack.c.b16 %v1141, %v1140
        %v1144 = vsel %vm884, %v1142, 0
        %v1147 = vsel %vm957, %v997, 0
        %1149 = vmatpush.bf16.msra.mxu0 0
        %1150 = vmatpush.bf16.msra.mxu0 0
        %1151 = vmatpush.bf16.msra.mxu0 0
        %1152 = vmatpush.bf16.msra.mxu0 0
        %1153 = vmatpush.bf16.msra.mxu0 0
        %1154 = vmatpush.bf16.msra.mxu0 0
        %1155 = vmatpush.bf16.msra.mxu0 0
        %1156 = vmatpush.bf16.msra.mxu0 %v1147
        %1157 = vmatmul.bf16.gmra.mxu0 %v1144
        %v1158 = vpop.f32.mrf.mxu0
        %v1159 = vadd.f32 %v1134, %v1158
        %v1160 = vpop.f32.mrf.mxu0
        %v1161 = vadd.f32 %v1136, %v1160
        %1162 = vdwg.mxu0
        %1163 = vrot.lane.b32.xlu0 %v881, 112
        %v1164 = vpop.permute.xlu0 %1163
        %1165 = vrot.lane.b32.xlu0 %v881, 80
        %v1166 = vpop.permute.xlu0 %1165
        %v1168 = vsel %vm884, %v1164, 0
        %v1171 = vsel %vm884, %v1166, 0
        %1173 = vmatpush.bf16.xpose.msra.mxu0 0
        %1174 = vmatpush.bf16.xpose.msra.mxu0 0
        %1175 = vmatpush.bf16.xpose.msra.mxu0 0
        %1176 = vmatpush.bf16.xpose.msra.mxu0 0
        %1177 = vmatpush.bf16.xpose.msra.mxu0 0
        %1178 = vmatpush.bf16.xpose.msra.mxu0 0
        %1179 = vmatpush.bf16.xpose.msra.mxu0 0
        %1180 = vmatpush.bf16.xpose.msra.mxu0 %v1171
        %1181 = vmatmul.bf16.gmra.mxu0 %v1168
        %v1182 = vpop.f32.mrf.mxu0
        %v1183 = vadd.f32 %v875, %v1182
        %v1184 = vpop.f32.mrf.mxu0
        %1185 = vdwg.mxu0
        %1186 = vrot.lane.b32.xlu0 %v906, 112
        %v1187 = vpop.permute.xlu0 %1186
        %1188 = vrot.lane.b32.xlu0 %v906, 80
        %v1189 = vpop.permute.xlu0 %1188
        %v1191 = vsel %vm884, %v1187, 0
        %v1194 = vsel %vm884, %v1189, 0
        %1196 = vmatpush.bf16.xpose.msra.mxu0 0
        %1197 = vmatpush.bf16.xpose.msra.mxu0 0
        %1198 = vmatpush.bf16.xpose.msra.mxu0 0
        %1199 = vmatpush.bf16.xpose.msra.mxu0 0
        %1200 = vmatpush.bf16.xpose.msra.mxu0 0
        %1201 = vmatpush.bf16.xpose.msra.mxu0 0
        %1202 = vmatpush.bf16.xpose.msra.mxu0 0
        %1203 = vmatpush.bf16.xpose.msra.mxu0 %v1194
        %1204 = vmatmul.bf16.gmra.mxu0 %v1191
        %v1205 = vpop.f32.mrf.mxu0
        %v1206 = vadd.f32 %v876, %v1205
        %v1207 = vpop.f32.mrf.mxu0
        %1208 = vdwg.mxu0
        %v1209 = vsel %vm884, %v1183, -inf
        %1210 = vmax.xlane.f32.xlu0 %v1209
        %v1211 = vpop.xlane.xlu0 %1210
        %v1212 = vsel %vm884, %v1206, -inf
        %1213 = vmax.xlane.f32.xlu0 %v1212
        %v1214 = vpop.xlane.xlu0 %1213
        %v1215 = vsub.f32 %v1183, %v1211
        %v1216 = vsub.f32 %v1206, %v1214
        %v1217 = vmul.f32 %v1215, 1.442695
        %v1218 = vpow.pop %v1217
        %v1219 = vmul.f32 %v1216, 1.442695
        %v1220 = vpow.pop %v1219
        %v1221 = vsel %vm884, %v1218, 0.0
        %1222 = vadd.xlane.f32.xlu0 %v1221
        %v1223 = vpop.xlane.xlu0 %1222
        %v1224 = vsel %vm884, %v1220, 0.0
        %1225 = vadd.xlane.f32.xlu0 %v1224
        %v1226 = vpop.xlane.xlu0 %1225
        %v1227 = vrcp.pop %v1223
        %v1228 = vrcp.pop %v1226
        %v1229 = vmul.f32 %v1218, %v1227
        %v1230 = vmul.f32 %v1220, %v1228
        %v1231 = vpack.c.bf16 %v1229, %v1229
        %v1232 = vpack.c.bf16 %v1230, %v1230
        %1233 = vrot.lane.b32.xlu0 %v881, 48
        %v1234 = vpop.permute.xlu0 %1233
        %v1236 = vsel %vm884, %v1231, 0
        %v1239 = vsel %vm957, %v1234, 0
        %1241 = vmatpush.bf16.msra.mxu0 0
        %1242 = vmatpush.bf16.msra.mxu0 0
        %1243 = vmatpush.bf16.msra.mxu0 0
        %1244 = vmatpush.bf16.msra.mxu0 0
        %1245 = vmatpush.bf16.msra.mxu0 0
        %1246 = vmatpush.bf16.msra.mxu0 0
        %1247 = vmatpush.bf16.msra.mxu0 0
        %1248 = vmatpush.bf16.msra.mxu0 %v1239
        %1249 = vmatmul.bf16.gmra.mxu0 %v1236
        %v1250 = vpop.f32.mrf.mxu0
        %v1251 = vadd.f32 0.0, %v1250
        %v1252 = vpop.f32.mrf.mxu0
        %1253 = vdwg.mxu0
        %1254 = vrot.lane.b32.xlu0 %v906, 48
        %v1255 = vpop.permute.xlu0 %1254
        %v1257 = vsel %vm884, %v1232, 0
        %v1260 = vsel %vm957, %v1255, 0
        %1262 = vmatpush.bf16.msra.mxu0 0
        %1263 = vmatpush.bf16.msra.mxu0 0
        %1264 = vmatpush.bf16.msra.mxu0 0
        %1265 = vmatpush.bf16.msra.mxu0 0
        %1266 = vmatpush.bf16.msra.mxu0 0
        %1267 = vmatpush.bf16.msra.mxu0 0
        %1268 = vmatpush.bf16.msra.mxu0 0
        %1269 = vmatpush.bf16.msra.mxu0 %v1260
        %1270 = vmatmul.bf16.gmra.mxu0 %v1257
        %v1271 = vpop.f32.mrf.mxu0
        %v1272 = vadd.f32 0.0, %v1271
        %v1273 = vpop.f32.mrf.mxu0
        %1274 = vdwg.mxu0
        %v1275 = vpack.c.bf16 %v1251, %v1251
        %v1276 = vpack.c.bf16 %v1272, %v1272
        %v1277 = vld [vmem:[%s725 + $0x8] sm:$0xf]
        %v1280 = vunpack.c.l.b16 %v1275
        %v1281 = vunpack.c.l.b16 %v1276
        %v1282 = vpack.c.b16 %v1281, %v1280
        %v1284 = vsel %vm884, %v1282, 0
        %v1287 = vsel %vm957, %v1277, 0
        %1289 = vmatpush.bf16.msra.mxu0 0
        %1290 = vmatpush.bf16.msra.mxu0 0
        %1291 = vmatpush.bf16.msra.mxu0 0
        %1292 = vmatpush.bf16.msra.mxu0 0
        %1293 = vmatpush.bf16.msra.mxu0 0
        %1294 = vmatpush.bf16.msra.mxu0 0
        %1295 = vmatpush.bf16.msra.mxu0 0
        %1296 = vmatpush.bf16.msra.mxu0 %v1287
        %1297 = vmatmul.bf16.gmra.mxu0 %v1284
        %v1298 = vpop.f32.mrf.mxu0
        %v1299 = vadd.f32 0.0, %v1298
        %v1300 = vpop.f32.mrf.mxu0
        %v1301 = vadd.f32 0.0, %v1300
        %1302 = vdwg.mxu0
        %v1303 = vadd.f32 %v1159, %v1299
        %v1304 = vadd.f32 %v1161, %v1301
        %1305 = vrot.lane.b32.xlu0 %v881, 104
        %v1306 = vpop.permute.xlu0 %1305
        %1307 = vrot.lane.b32.xlu0 %v881, 72
        %v1308 = vpop.permute.xlu0 %1307
        %v1310 = vsel %vm884, %v1306, 0
        %v1313 = vsel %vm884, %v1308, 0
        %1315 = vmatpush.bf16.xpose.msra.mxu0 0
        %1316 = vmatpush.bf16.xpose.msra.mxu0 0
        %1317 = vmatpush.bf16.xpose.msra.mxu0 0
        %1318 = vmatpush.bf16.xpose.msra.mxu0 0
        %1319 = vmatpush.bf16.xpose.msra.mxu0 0
        %1320 = vmatpush.bf16.xpose.msra.mxu0 0
        %1321 = vmatpush.bf16.xpose.msra.mxu0 0
        %1322 = vmatpush.bf16.xpose.msra.mxu0 %v1313
        %1323 = vmatmul.bf16.gmra.mxu0 %v1310
        %v1324 = vpop.f32.mrf.mxu0
        %v1325 = vadd.f32 %v875, %v1324
        %v1326 = vpop.f32.mrf.mxu0
        %1327 = vdwg.mxu0
        %1328 = vrot.lane.b32.xlu0 %v906, 104
        %v1329 = vpop.permute.xlu0 %1328
        %1330 = vrot.lane.b32.xlu0 %v906, 72
        %v1331 = vpop.permute.xlu0 %1330
        %v1333 = vsel %vm884, %v1329, 0
        %v1336 = vsel %vm884, %v1331, 0
        %1338 = vmatpush.bf16.xpose.msra.mxu0 0
        %1339 = vmatpush.bf16.xpose.msra.mxu0 0
        %1340 = vmatpush.bf16.xpose.msra.mxu0 0
        %1341 = vmatpush.bf16.xpose.msra.mxu0 0
        %1342 = vmatpush.bf16.xpose.msra.mxu0 0
        %1343 = vmatpush.bf16.xpose.msra.mxu0 0
        %1344 = vmatpush.bf16.xpose.msra.mxu0 0
        %1345 = vmatpush.bf16.xpose.msra.mxu0 %v1336
        %1346 = vmatmul.bf16.gmra.mxu0 %v1333
        %v1347 = vpop.f32.mrf.mxu0
        %v1348 = vadd.f32 %v876, %v1347
        %v1349 = vpop.f32.mrf.mxu0
        %1350 = vdwg.mxu0
        %v1351 = vsel %vm884, %v1325, -inf
        %1352 = vmax.xlane.f32.xlu0 %v1351
        %v1353 = vpop.xlane.xlu0 %1352
        %v1354 = vsel %vm884, %v1348, -inf
        %1355 = vmax.xlane.f32.xlu0 %v1354
        %v1356 = vpop.xlane.xlu0 %1355
        %v1357 = vsub.f32 %v1325, %v1353
        %v1358 = vsub.f32 %v1348, %v1356
        %v1359 = vmul.f32 %v1357, 1.442695
        %v1360 = vpow.pop %v1359
        %v1361 = vmul.f32 %v1358, 1.442695
        %v1362 = vpow.pop %v1361
        %v1363 = vsel %vm884, %v1360, 0.0
        %1364 = vadd.xlane.f32.xlu0 %v1363
        %v1365 = vpop.xlane.xlu0 %1364
        %v1366 = vsel %vm884, %v1362, 0.0
        %1367 = vadd.xlane.f32.xlu0 %v1366
        %v1368 = vpop.xlane.xlu0 %1367
        %v1369 = vrcp.pop %v1365
        %v1370 = vrcp.pop %v1368
        %v1371 = vmul.f32 %v1360, %v1369
        %v1372 = vmul.f32 %v1362, %v1370
        %v1373 = vpack.c.bf16 %v1371, %v1371
        %v1374 = vpack.c.bf16 %v1372, %v1372
        %1375 = vrot.lane.b32.xlu0 %v881, 40
        %v1376 = vpop.permute.xlu0 %1375
        %v1378 = vsel %vm884, %v1373, 0
        %v1381 = vsel %vm957, %v1376, 0
        %1383 = vmatpush.bf16.msra.mxu0 0
        %1384 = vmatpush.bf16.msra.mxu0 0
        %1385 = vmatpush.bf16.msra.mxu0 0
        %1386 = vmatpush.bf16.msra.mxu0 0
        %1387 = vmatpush.bf16.msra.mxu0 0
        %1388 = vmatpush.bf16.msra.mxu0 0
        %1389 = vmatpush.bf16.msra.mxu0 0
        %1390 = vmatpush.bf16.msra.mxu0 %v1381
        %1391 = vmatmul.bf16.gmra.mxu0 %v1378
        %v1392 = vpop.f32.mrf.mxu0
        %v1393 = vadd.f32 0.0, %v1392
        %v1394 = vpop.f32.mrf.mxu0
        %1395 = vdwg.mxu0
        %1396 = vrot.lane.b32.xlu0 %v906, 40
        %v1397 = vpop.permute.xlu0 %1396
        %v1399 = vsel %vm884, %v1374, 0
        %v1402 = vsel %vm957, %v1397, 0
        %1404 = vmatpush.bf16.msra.mxu0 0
        %1405 = vmatpush.bf16.msra.mxu0 0
        %1406 = vmatpush.bf16.msra.mxu0 0
        %1407 = vmatpush.bf16.msra.mxu0 0
        %1408 = vmatpush.bf16.msra.mxu0 0
        %1409 = vmatpush.bf16.msra.mxu0 0
        %1410 = vmatpush.bf16.msra.mxu0 0
        %1411 = vmatpush.bf16.msra.mxu0 %v1402
        %1412 = vmatmul.bf16.gmra.mxu0 %v1399
        %v1413 = vpop.f32.mrf.mxu0
        %v1414 = vadd.f32 0.0, %v1413
        %v1415 = vpop.f32.mrf.mxu0
        %1416 = vdwg.mxu0
        %v1417 = vpack.c.bf16 %v1393, %v1393
        %v1418 = vpack.c.bf16 %v1414, %v1414
        %v1419 = vld [vmem:[%s725 + $0xc] sm:$0xf]
        %v1422 = vunpack.c.l.b16 %v1417
        %v1423 = vunpack.c.l.b16 %v1418
        %v1424 = vpack.c.b16 %v1423, %v1422
        %v1426 = vsel %vm884, %v1424, 0
        %v1429 = vsel %vm957, %v1419, 0
        %1431 = vmatpush.bf16.msra.mxu0 0
        %1432 = vmatpush.bf16.msra.mxu0 0
        %1433 = vmatpush.bf16.msra.mxu0 0
        %1434 = vmatpush.bf16.msra.mxu0 0
        %1435 = vmatpush.bf16.msra.mxu0 0
        %1436 = vmatpush.bf16.msra.mxu0 0
        %1437 = vmatpush.bf16.msra.mxu0 0
        %1438 = vmatpush.bf16.msra.mxu0 %v1429
        %1439 = vmatmul.bf16.gmra.mxu0 %v1426
        %v1440 = vpop.f32.mrf.mxu0
        %v1441 = vadd.f32 0.0, %v1440
        %v1442 = vpop.f32.mrf.mxu0
        %v1443 = vadd.f32 0.0, %v1442
        %1444 = vdwg.mxu0
        %v1445 = vadd.f32 %v1303, %v1441
        %v1446 = vadd.f32 %v1304, %v1443
        %v1447 = vld [vmem:[%s728] sm:$0x1]
        %v1449 = vperm.slane %v1447, 0
        %v1451 = vadd.f32 %v1445, %v1449
        %v1452 = vadd.f32 %v1446, %v1449
        %v1453 = vadd.f32 %v759, %v1451
        %v1454 = vadd.f32 %v760, %v1452
        %v1455 = vld [vmem:[%s731] sm:$0x1]
        %v1456 = vld [vmem:[%s628] sm:$0x1]
        %v1457 = vsel %vm765, %v1453, 0.0
        %1458 = vadd.xlane.f32.xlu0 %v1457
        %v1459 = vpop.xlane.xlu0 %1458
        %v1460 = vsel %vm765, %v1454, 0.0
        %1461 = vadd.xlane.f32.xlu0 %v1460
        %v1462 = vpop.xlane.xlu0 %1461
        %v1463 = vmul.f32 %v1459, %v778
        %v1464 = vmul.f32 %v1462, %v778
        %v1465 = vsub.f32 %v1453, %v1463
        %v1466 = vsub.f32 %v1454, %v1464
        %v1467 = vmul.f32 %v1465, %v1465
        %v1468 = vmul.f32 %v1466, %v1466
        %v1469 = vsel %vm765, %v1467, 0.0
        %1470 = vadd.xlane.f32.xlu0 %v1469
        %v1471 = vpop.xlane.xlu0 %1470
        %v1472 = vsel %vm765, %v1468, 0.0
        %1473 = vadd.xlane.f32.xlu0 %v1472
        %v1474 = vpop.xlane.xlu0 %1473
        %v1475 = vmul.f32 %v1471, %v778
        %v1476 = vmul.f32 %v1474, %v778
        %v1477 = vadd.f32 %v1475, 1e-05
        %v1478 = vadd.f32 %v1476, 1e-05
        %v1479 = vrsqrt.pop %v1477
        %v1480 = vmul.f32 %v1479, %v1477
        %v1481 = vmul.f32 %v1480, %v1479
        %v1482 = vmul.f32 0.5, %v1481
        %v1483 = vsub.f32 1.5, %v1482
        %v1484 = vmul.f32 %v1479, %v1483
        %vm1485 = vweird.f32 %v1477
        %vm1486 = vweird.f32 %v1479
        %vm1487 = vmor %vm1485, %vm1486
        %v1488 = vsel %vm1487, %v1479, %v1484
        %v1489 = vrsqrt.pop %v1478
        %v1490 = vmul.f32 %v1489, %v1478
        %v1491 = vmul.f32 %v1490, %v1489
        %v1492 = vmul.f32 0.5, %v1491
        %v1493 = vsub.f32 1.5, %v1492
        %v1494 = vmul.f32 %v1489, %v1493
        %vm1495 = vweird.f32 %v1478
        %vm1496 = vweird.f32 %v1489
        %vm1497 = vmor %vm1495, %vm1496
        %v1498 = vsel %vm1497, %v1489, %v1494
        %v1499 = vmul.f32 %v1465, %v1488
        %v1500 = vmul.f32 %v1466, %v1498
        %v1502 = vperm.slane %v1455, 0
        %v1504 = vmul.f32 %v1499, %v1502
        %v1505 = vmul.f32 %v1500, %v1502
        %v1507 = vperm.slane %v1456, 0
        %v1509 = vadd.f32 %v1504, %v1507
        %v1510 = vadd.f32 %v1505, %v1507
        %v1511 = vpack.c.bf16 %v1509, %v1509
        %v1512 = vpack.c.bf16 %v1510, %v1510
        %v1513 = vld [vmem:[%s736] sm:$0xf]
        %v1514 = vld [vmem:[%s736 + $0x4] sm:$0xf]
        %v1515 = vld [vmem:[%s736 + $0x8] sm:$0xf]
        %v1516 = vld [vmem:[%s736 + $0xc] sm:$0xf]
        %v1517 = vld [vmem:[%s739] sm:$0x1]
        %v1519 = vperm.slane %v1517, 0
        %v1523 = vunpack.c.l.b16 %v1511
        %v1524 = vunpack.c.l.b16 %v1512
        %v1525 = vpack.c.b16 %v1524, %v1523
        %v1530 = vunpack.c.l.b16 %v1513
        %v1531 = vunpack.c.l.b16 %v1514
        %v1532 = vunpack.c.l.b16 %v1515
        %v1533 = vunpack.c.l.b16 %v1516
        %v1534 = vpack.c.b16 %v1531, %v1530
        %v1535 = vpack.c.b16 %v1533, %v1532
        %v1539 = vsel %vm765, %v1525, 0
        %1541 = vmatpush.bf16.msra.mxu0 0
        %1542 = vmatpush.bf16.msra.mxu0 0
        %1543 = vmatpush.bf16.msra.mxu0 0
        %1544 = vmatpush.bf16.msra.mxu0 0
        %1545 = vmatpush.bf16.msra.mxu0 0
        %1546 = vmatpush.bf16.msra.mxu0 0
        %1547 = vmatpush.bf16.msra.mxu0 %v1535
        %1548 = vmatpush.bf16.msra.mxu0 %v1534
        %1549 = vmatmul.bf16.gmra.mxu0 %v1539
        %v1550 = vpop.f32.mrf.mxu0
        %v1551 = vadd.f32 %v1519, %v1550
        %v1552 = vpop.f32.mrf.mxu0
        %v1553 = vadd.f32 %v1519, %v1552
        %1554 = vdwg.mxu0
        %v1555 = vmul.f32 %v1551, 0.5
        %v1556 = vmul.f32 %v1553, 0.5
        %v1557 = vmul.f32 %v1551, 0.70710677
        %v1558 = vmul.f32 %v1553, 0.70710677
        %v1559 = vmul.f32 %v1557, %v1557
        %v1560 = vmin.f32 16.0, %v1559
        %v1561 = vmul.f32 %v1560, 2.1237322e-06
        %v1562 = vadd.f32 %v1561, 0.00028619796
        %v1563 = vmul.f32 %v1560, %v1562
        %v1564 = vadd.f32 %v1563, 0.0036580483
        %v1565 = vmul.f32 %v1560, %v1564
        %v1566 = vadd.f32 %v1565, 0.05243302
        %v1567 = vmul.f32 %v1560, %v1566
        %v1568 = vadd.f32 %v1567, 0.18741608
        %v1569 = vmul.f32 %v1560, %v1568
        %v1570 = vadd.f32 %v1569, 1.1283791
        %v1571 = vmul.f32 %v1557, %v1570
        %v1572 = vmul.f32 %v1560, 3.8918573e-05
        %v1573 = vadd.f32 %v1572, 0.001143296
        %v1574 = vmul.f32 %v1560, %v1573
        %v1575 = vadd.f32 %v1574, 0.014752088
        %v1576 = vmul.f32 %v1560, %v1575
        %v1577 = vadd.f32 %v1576, 0.112945676
        %v1578 = vmul.f32 %v1560, %v1577
        %v1579 = vadd.f32 %v1578, 0.4994258
        %v1580 = vmul.f32 %v1560, %v1579
        %v1581 = vadd.f32 %v1580, 1.0
        %v1582 = vrcp.pop %v1581
        %v1583 = vmul.f32 %v1581, %v1582
        %v1584 = vsub.f32 1.0, %v1583
        %v1585 = vmul.f32 %v1582, %v1584
        %v1586 = vadd.f32 %v1582, %v1585
        %vm1587 = vweird.f32 %v1581
        %vm1588 = vweird.f32 %v1582
        %vm1589 = vmor %vm1587, %vm1588
        %v1590 = vsel %vm1589, %v1582, %v1586
        %v1591 = vand.u32 2147483647, %v1581
        %vm1592 = vcmp.eq.f32.partialorder %v1591, 8.507059e+37
        %v1593 = vand.u32 %v1581, 2147483648
        %v1594 = vor.u32 1.1754944e-38, %v1593
        %v1595 = vsel %vm1592, %v1594, %v1590
        %v1596 = vmul.f32 %v1571, %v1595
        %v1597 = vmin.f32 %v1596, 1.0
        %v1598 = vmax.f32 %v1597, -1.0
        %v1599 = vmul.f32 %v1558, %v1558
        %v1600 = vmin.f32 16.0, %v1599
        %v1601 = vmul.f32 %v1600, 2.1237322e-06
        %v1602 = vadd.f32 %v1601, 0.00028619796
        %v1603 = vmul.f32 %v1600, %v1602
        %v1604 = vadd.f32 %v1603, 0.0036580483
        %v1605 = vmul.f32 %v1600, %v1604
        %v1606 = vadd.f32 %v1605, 0.05243302
        %v1607 = vmul.f32 %v1600, %v1606
        %v1608 = vadd.f32 %v1607, 0.18741608
        %v1609 = vmul.f32 %v1600, %v1608
        %v1610 = vadd.f32 %v1609, 1.1283791
        %v1611 = vmul.f32 %v1558, %v1610
        %v1612 = vmul.f32 %v1600, 3.8918573e-05
        %v1613 = vadd.f32 %v1612, 0.001143296
        %v1614 = vmul.f32 %v1600, %v1613
        %v1615 = vadd.f32 %v1614, 0.014752088
        %v1616 = vmul.f32 %v1600, %v1615
        %v1617 = vadd.f32 %v1616, 0.112945676
        %v1618 = vmul.f32 %v1600, %v1617
        %v1619 = vadd.f32 %v1618, 0.4994258
        %v1620 = vmul.f32 %v1600, %v1619
        %v1621 = vadd.f32 %v1620, 1.0
        %v1622 = vrcp.pop %v1621
        %v1623 = vmul.f32 %v1621, %v1622
        %v1624 = vsub.f32 1.0, %v1623
        %v1625 = vmul.f32 %v1622, %v1624
        %v1626 = vadd.f32 %v1622, %v1625
        %vm1627 = vweird.f32 %v1621
        %vm1628 = vweird.f32 %v1622
        %vm1629 = vmor %vm1627, %vm1628
        %v1630 = vsel %vm1629, %v1622, %v1626
        %v1631 = vand.u32 2147483647, %v1621
        %vm1632 = vcmp.eq.f32.partialorder %v1631, 8.507059e+37
        %v1633 = vand.u32 %v1621, 2147483648
        %v1634 = vor.u32 1.1754944e-38, %v1633
        %v1635 = vsel %vm1632, %v1634, %v1630
        %v1636 = vmul.f32 %v1611, %v1635
        %v1637 = vmin.f32 %v1636, 1.0
        %v1638 = vmax.f32 %v1637, -1.0
        %v1639 = vadd.f32 %v1598, 1.0
        %v1640 = vadd.f32 %v1638, 1.0
        %v1641 = vmul.f32 %v1555, %v1639
        %v1642 = vmul.f32 %v1556, %v1640
        %v1643 = vpack.c.bf16 %v1642, %v1641
        %v1644 = vld [vmem:[%s744] sm:$0xf]
        %v1645 = vld [vmem:[%s744 + $0x4] sm:$0xf]
        %v1646 = vld [vmem:[%s744 + $0x8] sm:$0xf]
        %v1647 = vld [vmem:[%s744 + $0xc] sm:$0xf]
        %v1648 = vld [vmem:[%s744 + $0x10] sm:$0xf]
        %v1649 = vld [vmem:[%s744 + $0x14] sm:$0xf]
        %v1650 = vld [vmem:[%s744 + $0x18] sm:$0xf]
        %v1651 = vld [vmem:[%s744 + $0x1c] sm:$0xf]
        %v1652 = vld [vmem:[%s747] sm:$0x1]
        %v1654 = vperm.slane %v1652, 0
        %v1664 = vunpack.c.l.b16 %v1644
        %v1665 = vunpack.c.l.b16 %v1645
        %v1666 = vunpack.c.l.b16 %v1646
        %v1667 = vunpack.c.l.b16 %v1647
        %v1668 = vunpack.c.l.b16 %v1648
        %v1669 = vunpack.c.l.b16 %v1649
        %v1670 = vunpack.c.l.b16 %v1650
        %v1671 = vunpack.c.l.b16 %v1651
        %v1672 = vpack.c.b16 %v1665, %v1664
        %v1673 = vpack.c.b16 %v1667, %v1666
        %v1674 = vpack.c.b16 %v1669, %v1668
        %v1675 = vpack.c.b16 %v1671, %v1670
        %vm1680 = vcmask 523264
        %v1682 = vsel %vm1680, %v1643, 0
        %1684 = vmatpush.bf16.msra.mxu0 0
        %1685 = vmatpush.bf16.msra.mxu0 0
        %1686 = vmatpush.bf16.msra.mxu0 0
        %1687 = vmatpush.bf16.msra.mxu0 0
        %1688 = vmatpush.bf16.msra.mxu0 %v1675
        %1689 = vmatpush.bf16.msra.mxu0 %v1674
        %1690 = vmatpush.bf16.msra.mxu0 %v1673
        %1691 = vmatpush.bf16.msra.mxu0 %v1672
        %1692 = vmatmul.bf16.gmra.mxu0 %v1682
        %v1693 = vpop.f32.mrf.mxu0
        %v1694 = vadd.f32 %v1654, %v1693
        %v1695 = vpop.f32.mrf.mxu0
        %v1696 = vadd.f32 %v1654, %v1695
        %1697 = vdwg.mxu0
        %v1698 = vadd.f32 %v1453, %v1694
        %v1699 = vadd.f32 %v1454, %v1696
        %1700 = vst.msk [vmem:[#allocation2] sm:$0xff] %vm765, %v1698
        %1701 = vst.msk [vmem:[#allocation2 + $0x8] sm:$0xff] %vm765, %v1699
        %p1702 = scmp.eq.s32.totalorder %s33, 1
        // Predicated region
        $region101: #{tpu_custom_call.1} parent=75 // pred_check
          %p1703 = pneg %p1702
        $region102: #{tpu_custom_call.1} parent=75 // pred_check_branch
          %1705 = sbr.rel (%p1703) target = $region104
        $region103: #{tpu_custom_call.1} parent=75 // pred_region
          %1706 = vst.msk [vmem:[#allocation11] sm:$0xff] %vm765, %v1698
          %1707 = vst.msk [vmem:[#allocation11 + $0x8] sm:$0xff] %vm765, %v1699
        $region104: #{tpu_custom_call.1} parent=75 // pred_fallthru
          _
        // Predicated region
        $region105: #{tpu_custom_call.1} parent=75 // pred_check
          %p1708 = pneg %p422
        $region106: #{tpu_custom_call.1} parent=75 // pred_check_branch
          %1710 = sbr.rel (%p1708) target = $region108
        $region107: #{tpu_custom_call.1} parent=75 // pred_region
          %s1711 = smul.u32 2, %s32
          %1713 = vsyncadd [#allocation5], 0
          %s1714 = smul.addr %s1711, 8
          %s1715 = scalar_lea.hbm %s14, %s1714
          %s1716 = sshll.u32 [#allocation11], 4
          %s1717 = int_to_ptr.vmem [resolvable:$true] %s1716
          %s1718 = sshll.u32 %s1715, 4
          %s1719 = int_to_ptr.hbm [resolvable:$true] %s1718
          %1724 = dma.vmem_to_hbm [thread:$0]  %s1717, 256, %s1719, [#allocation5], 128, 128, 8
        $region108: #{tpu_custom_call.1} parent=75 // pred_fallthru
          _
        // Predicated region
        $region109: #{tpu_custom_call.1} parent=75 // pred_check
          %p1725 = pneg %p422
        $region110: #{tpu_custom_call.1} parent=75 // pred_check_branch
          %1727 = sbr.rel (%p1725) target = $region112
        $region111: #{tpu_custom_call.1} parent=75 // pred_region
          %1729 = dma.done [#allocation5], 256
        $region112: #{tpu_custom_call.1} parent=75 // pred_fallthru
          _
      $region76: #{tpu_custom_call.1} parent=5 // pred_fallthru
        _
      %p1730 = scmp.le.s32.totalorder 2, %s23
      // Predicated region
      $region113: #{tpu_custom_call.1} parent=5 // pred_check
        %p1731 = pneg %p1730
      $region114: #{tpu_custom_call.1} parent=5 // pred_check_branch
        %1733 = sbr.rel (%p1731) target = $region116
      $region115: #{tpu_custom_call.1} parent=5 // pred_region
        %s1734 = ssub.s32 %s23, 2
      $region116: #{tpu_custom_call.1} parent=5 // pred_fallthru
        _
    $region6: #{tpu_custom_call.1} parent=1 // loop_footer
      %s27 = sadd.s32 1, %s23
    $region7: #{tpu_custom_call.1} parent=1 // loop_footer_branch
      %22 = sbr.rel target = $region3
    $region8: #{tpu_custom_call.1} parent=1 // loop_exit
      _
    %1735 = vsyncpa [#allocation4], 1
    %s1736 = scalar_lea.sflag [#allocation4], 1
    %1737 = vsyncpa %s1736, 1
    %1738 = vsyncpa [#allocation7], 1
    %1739 = vsyncpa [#allocation5], 1
    %s1740 = scalar_lea.sflag [#allocation5], 1
    %1741 = vsyncpa %s1740, 1

</llo_original>
